<compile_context>
chip_gen: v5e
topology: v5e:2x2
jax: 0.10.0
libtpu: 0.0.40
codegen_flags: <defaults>
</compile_context>

<pallas_src>
import jax
import jax.numpy as jnp
from jax import lax
from jax.experimental import pallas as pl
from jax.experimental.pallas import tpu as pltpu

# args.* hyper-parameters (synthetic, small)
LATDIM = 32          # args.latdim
NUM_HEADS = 4        # args.head
HEAD_DIM = LATDIM // NUM_HEADS
N_NODES = 16         # number of node embeddings per graph
N_ANCHOR = 8         # args.anchor
LN_EPS = 1e-5        # nn.LayerNorm default
# args.act == 'relu'

# ----- parameter slab layout (rows of a (SLAB_ROWS, LATDIM) f32 array) -------
A_OFF = 0                              # A_h, h=0..3   (4 x 32 rows)
B_OFF = NUM_HEADS * LATDIM             # B_h, h=0..3   (4 x 32 rows)
W1_OFF = 2 * NUM_HEADS * LATDIM        # W1^T          (32 rows)
W2_OFF = W1_OFF + LATDIM               # W2^T          (32 rows)
VEC_OFF = W2_OFF + LATDIM              # b1,b2,g1,be1,g2,be2 (6 rows)
SLAB_ROWS = ((VEC_OFF + 6 + 7) // 8) * 8   # pad to sublane multiple -> 328


# ----------------------------- kernel ---------------------------------------

def _layernorm(x, gamma, beta):
    mean = jnp.mean(x, axis=-1, keepdims=True)
    xc = x - mean
    var = jnp.mean(xc * xc, axis=-1, keepdims=True)     # biased var (PyTorch LN)
    return xc * lax.rsqrt(var + LN_EPS) * gamma + beta


def _gt_layer_kernel(idx_ref,        # VMEM (N_ANCHOR, 1) int32  anchor indices
                     emb_ref,        # VMEM (N_NODES, LATDIM) f32
                     p_ref,          # VMEM (SLAB_ROWS, LATDIM) f32 packed params
                     out_ref):       # VMEM (N_NODES, LATDIM) f32
    emb = emb_ref[...]

    # ---- anchor gather: one-hot select matmul (VPU compare + MXU) -----------
    idx = idx_ref[...]                                               # (A, 1) i32
    node_ids = lax.broadcasted_iota(jnp.int32, (N_ANCHOR, N_NODES), 1)
    onehot = jnp.where(node_ids == idx, 1.0, 0.0)                    # (A, N) f32
    anchors = jnp.dot(onehot, emb, preferred_element_type=jnp.float32)

    # ---- shared-weight multi-head attention (bias=False, eval) --------------
    # Per-head folded weights (host-side):
    #   scores_h = (q @ A_h) @ kv^T        A_h = scale * Wq[h]^T Wk[h]
    #   out     += softmax_h @ (kv @ B_h)  B_h = Wv[h]^T Wo[:,h]^T
    # -> no lane slicing of activations, no head concat.
    def mha(q, kv):
        acc = jnp.zeros((q.shape[0], LATDIM), jnp.float32)
        for h in range(NUM_HEADS):                       # static unroll over heads
            a_h = p_ref[A_OFF + h * LATDIM:A_OFF + (h + 1) * LATDIM, :]
            b_h = p_ref[B_OFF + h * LATDIM:B_OFF + (h + 1) * LATDIM, :]
            t = jnp.dot(q, a_h, preferred_element_type=jnp.float32)   # (Sq, E)
            # (q @ A_h) @ kv^T expressed as a contraction on dim 1 of both
            # operands; kv is loop-invariant so any lowering-inserted transpose
            # is shared across heads (review item 8).
            s = lax.dot_general(t, kv,
                                dimension_numbers=(((1,), (1,)), ((), ())),
                                preferred_element_type=jnp.float32)   # (Sq, Skv)
            s = s - jnp.max(s, axis=-1, keepdims=True)   # stable softmax (keys)
            e = jnp.exp(s)
            p = e / jnp.sum(e, axis=-1, keepdims=True)   # exact divide
            vo = jnp.dot(kv, b_h, preferred_element_type=jnp.float32)  # (Skv, E)
            acc = acc + jnp.dot(p, vo, preferred_element_type=jnp.float32)
        return acc

    a_attn = mha(anchors, emb)
    anchors = a_attn + anchors                           # residual (in-kernel)
    e_attn = mha(emb, anchors)

    # ---- residual + LN1 -> (Linear+ReLU) x2 -> residual + LN2 ---------------
    b1 = p_ref[VEC_OFF + 0:VEC_OFF + 1, :]
    b2 = p_ref[VEC_OFF + 1:VEC_OFF + 2, :]
    g1 = p_ref[VEC_OFF + 2:VEC_OFF + 3, :]
    be1 = p_ref[VEC_OFF + 3:VEC_OFF + 4, :]
    g2 = p_ref[VEC_OFF + 4:VEC_OFF + 5, :]
    be2 = p_ref[VEC_OFF + 5:VEC_OFF + 6, :]

    h = _layernorm(e_attn + emb, g1, be1)
    f = jnp.maximum(
        jnp.dot(h, p_ref[W1_OFF:W1_OFF + LATDIM, :],
                preferred_element_type=jnp.float32) + b1, 0.0)
    f = jnp.maximum(
        jnp.dot(f, p_ref[W2_OFF:W2_OFF + LATDIM, :],
                preferred_element_type=jnp.float32) + b2, 0.0)
    # fc_dropout = identity in eval mode
    out_ref[...] = _layernorm(f + h, g2, be2)


# ----------------------------- wrapper --------------------------------------

@jax.jit
def gt_layer_forward(embeds, params_slab, anchor_idx):
    """embeds: (B, N_NODES, LATDIM) f32; anchor_idx: (B, N_ANCHOR, 1) int32.

    Each batch element is one independent original GTLayer forward.  The batch
    grid axis is "parallel" and the weight slab's index_map is constant, so the
    weights stay VMEM-resident across all graphs.
    """
    bsz = embeds.shape[0]
    return pl.pallas_call(
        _gt_layer_kernel,
        out_shape=jax.ShapeDtypeStruct((bsz, N_NODES, LATDIM), jnp.float32),
        grid_spec=pltpu.PrefetchScalarGridSpec(
            num_scalar_prefetch=0,
            grid=(bsz,),
            in_specs=[
                pl.BlockSpec((None, N_ANCHOR, 1), lambda b: (b, 0, 0)),
                pl.BlockSpec((None, N_NODES, LATDIM), lambda b: (b, 0, 0)),
                pl.BlockSpec((SLAB_ROWS, LATDIM), lambda b: (0, 0)),  # resident
            ],
            out_specs=pl.BlockSpec((None, N_NODES, LATDIM), lambda b: (b, 0, 0)),
        ),
        compiler_params=pltpu.CompilerParams(
            dimension_semantics=("parallel",)),
    )(anchor_idx, embeds, params_slab)


# ----------------------------- params ---------------------------------------

def init_params(key):
    ks = jax.random.split(key, 6)
    # MultiheadAttention reset: xavier_uniform_ on in_proj_weight (3E, E)
    xav = (6.0 / (3 * LATDIM + LATDIM)) ** 0.5
    in_proj = jax.random.uniform(ks[0], (3 * LATDIM, LATDIM), jnp.float32, -xav, xav)
    wq, wk, wv = in_proj[:LATDIM], in_proj[LATDIM:2 * LATDIM], in_proj[2 * LATDIM:]
    # out_proj / Linear reset: U(-1/sqrt(fan_in), 1/sqrt(fan_in))
    bnd = 1.0 / (LATDIM ** 0.5)
    wo = jax.random.uniform(ks[1], (LATDIM, LATDIM), jnp.float32, -bnd, bnd)
    w1 = jax.random.uniform(ks[2], (LATDIM, LATDIM), jnp.float32, -bnd, bnd)
    b1 = jax.random.uniform(ks[3], (1, LATDIM), jnp.float32, -bnd, bnd)
    w2 = jax.random.uniform(ks[4], (LATDIM, LATDIM), jnp.float32, -bnd, bnd)
    b2 = jax.random.uniform(ks[5], (1, LATDIM), jnp.float32, -bnd, bnd)
    ones = jnp.ones((1, LATDIM), jnp.float32)
    zeros = jnp.zeros((1, LATDIM), jnp.float32)

    # Host-side per-head weight folding (exact algebraic refactor of MHA):
    #   scores_h = scale * (x Wq^T)[:,h] (kv Wk^T)[:,h]^T = x (scale Wq[h]^T Wk[h]) kv^T
    #   out      = sum_h P_h (kv Wv^T)[:,h] (Wo^T)[h,:]   = sum_h P_h kv (Wv[h]^T Wo[:,h]^T)
    scale = 1.0 / (HEAD_DIM ** 0.5)
    a_blocks, b_blocks = [], []
    for h in range(NUM_HEADS):
        r = slice(h * HEAD_DIM, (h + 1) * HEAD_DIM)
        a_blocks.append(scale * (wq[r, :].T @ wk[r, :]))          # (E, E)
        b_blocks.append(wv[r, :].T @ wo[:, r].T)                  # (E, E)

    rows = a_blocks + b_blocks + [w1.T, w2.T, b1, b2, ones, zeros, ones, zeros]
    slab = jnp.concatenate(rows, axis=0).astype(jnp.float32)
    pad = SLAB_ROWS - slab.shape[0]
    slab = jnp.pad(slab, ((0, pad), (0, 0)))

    raw = dict(wq=wq, wk=wk, wv=wv, wo=wo, w1=w1, b1=b1, w2=w2, b2=b2,
               g1=ones, be1=zeros, g2=ones, be2=zeros)
    return slab, raw


# ----------------------------- reference (pure JAX) --------------------------

def _reference_forward(embeds, idx, raw):
    def mha(q, kv):
        qp, kp, vp = q @ raw["wq"].T, kv @ raw["wk"].T, kv @ raw["wv"].T
        outs = []
        for h in range(NUM_HEADS):
            sl = slice(h * HEAD_DIM, (h + 1) * HEAD_DIM)
            s = (qp[:, sl] @ kp[:, sl].T) / (HEAD_DIM ** 0.5)
            outs.append(jax.nn.softmax(s, axis=-1) @ vp[:, sl])
        return jnp.concatenate(outs, axis=-1) @ raw["wo"].T

    def ln(x, g, b):
        m = x.mean(-1, keepdims=True)
        v = ((x - m) ** 2).mean(-1, keepdims=True)
        return (x - m) / jnp.sqrt(v + LN_EPS) * g + b

    anchors = embeds[idx]
    anchors = mha(anchors, embeds) + anchors
    e = mha(embeds, anchors)
    h = ln(e + embeds, raw["g1"], raw["be1"])
    f = jnp.maximum(h @ raw["w1"].T + raw["b1"], 0.0)
    f = jnp.maximum(f @ raw["w2"].T + raw["b2"], 0.0)
    return ln(f + h, raw["g2"], raw["be2"])


# ----------------------------- main ------------------------------------------

if __name__ == "__main__":
    key = jax.random.PRNGKey(0)
    k_emb, k_perm, k_par = jax.random.split(key, 3)

    BATCH = 4   # independent graphs; each is one original GTLayer forward
    embeds = jax.random.normal(k_emb, (BATCH, N_NODES, LATDIM), jnp.float32)
    # torch.randperm equivalent (host-side glue); indices consumed in-kernel.
    perm_keys = jax.random.split(k_perm, BATCH)
    anchor_idx = jnp.stack(
        [jax.random.permutation(k, N_NODES)[:N_ANCHOR] for k in perm_keys]
    ).astype(jnp.int32)[..., None]                       # (B, A, 1)

    params_slab, raw = init_params(k_par)

    out = gt_layer_forward(embeds, params_slab, anchor_idx)
    jax.block_until_ready(out)
    assert out.shape == (BATCH, N_NODES, LATDIM) and out.dtype == jnp.float32

    # sanity check vs. pure-JAX reference of the PyTorch module (eval mode)
    ref = jnp.stack([_reference_forward(embeds[b], anchor_idx[b, :, 0], raw)
                     for b in range(BATCH)])
    max_err = float(jnp.max(jnp.abs(out - ref)))
    assert max_err < 1e-3, f"mismatch vs reference: {max_err}"

    print("KERNEL_OK")
</pallas_src>

<mosaic_0001>
module attributes {stable_mosaic.version = 11 : i64} {
  func.func @_gt_layer_kernel(%arg0: i32, %arg1: memref<1x8x1xi32, #tpu.memory_space<vmem>>, %arg2: memref<1x16x32xf32, #tpu.memory_space<vmem>>, %arg3: memref<328x32xf32, #tpu.memory_space<vmem>>, %arg4: memref<1x16x32xf32, #tpu.memory_space<vmem>>) attributes {dimension_semantics = [#tpu.dimension_semantics<parallel>], iteration_bounds = array<i64: 4>, scalar_prefetch = 0 : i64, scratch_operands = 0 : i64, tpu.core_type = #tpu.core_type<tc>, window_params = [{transform_indices = @transform_0, window_bounds = array<i64: 1, 8, 1>}, {transform_indices = @transform_1, window_bounds = array<i64: 1, 16, 32>}, {pipeline_mode = #tpu.pipeline_mode<synchronous>, transform_indices = @transform_2, window_bounds = array<i64: 328, 32>}, {transform_indices = @transform_3, window_bounds = array<i64: 1, 16, 32>}]} {
    %c0 = arith.constant 0 : index
    %c0_0 = arith.constant 0 : index
    %c0_1 = arith.constant 0 : index
    %0 = vector.load %arg2[%c0, %c0_0, %c0_1] : memref<1x16x32xf32, #tpu.memory_space<vmem>>, vector<1x16x32xf32>
    %1 = vector.shape_cast %0 : vector<1x16x32xf32> to vector<16x32xf32>
    %c0_2 = arith.constant 0 : index
    %c0_3 = arith.constant 0 : index
    %c0_4 = arith.constant 0 : index
    %2 = vector.load %arg1[%c0_2, %c0_3, %c0_4] : memref<1x8x1xi32, #tpu.memory_space<vmem>>, vector<1x8x1xi32>
    %3 = vector.shape_cast %2 : vector<1x8x1xi32> to vector<8x1xi32>
    %4 = tpu.iota {dimensions = array<i32: 1>} : vector<8x16xi32>
    %5 = vector.broadcast %3 : vector<8x1xi32> to vector<8x16xi32>
    %6 = arith.cmpi eq, %4, %5 : vector<8x16xi32>
    %cst = arith.constant 1.000000e+00 : f32
    %cst_5 = arith.constant 0.000000e+00 : f32
    %7 = vector.broadcast %cst : f32 to vector<8x16xf32>
    %8 = vector.broadcast %cst_5 : f32 to vector<8x16xf32>
    %9 = arith.select %6, %7, %8 : vector<8x16xi1>, vector<8x16xf32>
    %cst_6 = arith.constant dense<0.000000e+00> : vector<8x32xf32>
    %10 = tpu.matmul %9, %1, %cst_6 {dimension_numbers = #tpu.dot_dimension_numbers<[1], [0], [0], [1], [0, 0, 1, 1], [], []>} : vector<8x16xf32>, vector<16x32xf32>, vector<8x32xf32> -> vector<8x32xf32>
    %cst_7 = arith.constant 0.000000e+00 : f32
    %11 = vector.broadcast %cst_7 : f32 to vector<8x32xf32>
    %c0_8 = arith.constant 0 : index
    %c0_9 = arith.constant 0 : index
    %12 = vector.load %arg3[%c0_8, %c0_9] : memref<328x32xf32, #tpu.memory_space<vmem>>, vector<32x32xf32>
    %c128 = arith.constant 128 : index
    %c0_10 = arith.constant 0 : index
    %13 = vector.load %arg3[%c128, %c0_10] : memref<328x32xf32, #tpu.memory_space<vmem>>, vector<32x32xf32>
    %cst_11 = arith.constant dense<0.000000e+00> : vector<8x32xf32>
    %14 = tpu.matmul %10, %12, %cst_11 {dimension_numbers = #tpu.dot_dimension_numbers<[1], [0], [0], [1], [0, 0, 1, 1], [], []>} : vector<8x32xf32>, vector<32x32xf32>, vector<8x32xf32> -> vector<8x32xf32>
    %cst_12 = arith.constant dense<0.000000e+00> : vector<8x16xf32>
    %15 = tpu.matmul %14, %1, %cst_12 {dimension_numbers = #tpu.dot_dimension_numbers<[1], [1], [0], [0], [0, 0, 1, 0], [], []>} : vector<8x32xf32>, vector<16x32xf32>, vector<8x16xf32> -> vector<8x16xf32>
    %cst_13 = arith.constant dense<0xFF800000> : vector<8xf32>
    %16 = vector.multi_reduction <maximumf>, %15, %cst_13 [1] : vector<8x16xf32> to vector<8xf32>
    %17 = vector.shape_cast %16 : vector<8xf32> to vector<8x1xf32>
    %18 = vector.broadcast %17 : vector<8x1xf32> to vector<8x16xf32>
    %19 = arith.subf %15, %18 : vector<8x16xf32>
    %20 = math.exp %19 : vector<8x16xf32>
    %cst_14 = arith.constant dense<0.000000e+00> : vector<8xf32>
    %21 = vector.multi_reduction <add>, %20, %cst_14 [1] : vector<8x16xf32> to vector<8xf32>
    %22 = vector.shape_cast %21 : vector<8xf32> to vector<8x1xf32>
    %23 = vector.broadcast %22 : vector<8x1xf32> to vector<8x16xf32>
    %24 = arith.divf %20, %23 : vector<8x16xf32>
    %cst_15 = arith.constant dense<0.000000e+00> : vector<16x32xf32>
    %25 = tpu.matmul %1, %13, %cst_15 {dimension_numbers = #tpu.dot_dimension_numbers<[1], [0], [0], [1], [0, 0, 1, 1], [], []>} : vector<16x32xf32>, vector<32x32xf32>, vector<16x32xf32> -> vector<16x32xf32>
    %cst_16 = arith.constant dense<0.000000e+00> : vector<8x32xf32>
    %26 = tpu.matmul %24, %25, %cst_16 {dimension_numbers = #tpu.dot_dimension_numbers<[1], [0], [0], [1], [0, 0, 1, 1], [], []>} : vector<8x16xf32>, vector<16x32xf32>, vector<8x32xf32> -> vector<8x32xf32>
    %27 = arith.addf %11, %26 : vector<8x32xf32>
    %c32 = arith.constant 32 : index
    %c0_17 = arith.constant 0 : index
    %28 = vector.load %arg3[%c32, %c0_17] : memref<328x32xf32, #tpu.memory_space<vmem>>, vector<32x32xf32>
    %c160 = arith.constant 160 : index
    %c0_18 = arith.constant 0 : index
    %29 = vector.load %arg3[%c160, %c0_18] : memref<328x32xf32, #tpu.memory_space<vmem>>, vector<32x32xf32>
    %cst_19 = arith.constant dense<0.000000e+00> : vector<8x32xf32>
    %30 = tpu.matmul %10, %28, %cst_19 {dimension_numbers = #tpu.dot_dimension_numbers<[1], [0], [0], [1], [0, 0, 1, 1], [], []>} : vector<8x32xf32>, vector<32x32xf32>, vector<8x32xf32> -> vector<8x32xf32>
    %cst_20 = arith.constant dense<0.000000e+00> : vector<8x16xf32>
    %31 = tpu.matmul %30, %1, %cst_20 {dimension_numbers = #tpu.dot_dimension_numbers<[1], [1], [0], [0], [0, 0, 1, 0], [], []>} : vector<8x32xf32>, vector<16x32xf32>, vector<8x16xf32> -> vector<8x16xf32>
    %cst_21 = arith.constant dense<0xFF800000> : vector<8xf32>
    %32 = vector.multi_reduction <maximumf>, %31, %cst_21 [1] : vector<8x16xf32> to vector<8xf32>
    %33 = vector.shape_cast %32 : vector<8xf32> to vector<8x1xf32>
    %34 = vector.broadcast %33 : vector<8x1xf32> to vector<8x16xf32>
    %35 = arith.subf %31, %34 : vector<8x16xf32>
    %36 = math.exp %35 : vector<8x16xf32>
    %cst_22 = arith.constant dense<0.000000e+00> : vector<8xf32>
    %37 = vector.multi_reduction <add>, %36, %cst_22 [1] : vector<8x16xf32> to vector<8xf32>
    %38 = vector.shape_cast %37 : vector<8xf32> to vector<8x1xf32>
    %39 = vector.broadcast %38 : vector<8x1xf32> to vector<8x16xf32>
    %40 = arith.divf %36, %39 : vector<8x16xf32>
    %cst_23 = arith.constant dense<0.000000e+00> : vector<16x32xf32>
    %41 = tpu.matmul %1, %29, %cst_23 {dimension_numbers = #tpu.dot_dimension_numbers<[1], [0], [0], [1], [0, 0, 1, 1], [], []>} : vector<16x32xf32>, vector<32x32xf32>, vector<16x32xf32> -> vector<16x32xf32>
    %cst_24 = arith.constant dense<0.000000e+00> : vector<8x32xf32>
    %42 = tpu.matmul %40, %41, %cst_24 {dimension_numbers = #tpu.dot_dimension_numbers<[1], [0], [0], [1], [0, 0, 1, 1], [], []>} : vector<8x16xf32>, vector<16x32xf32>, vector<8x32xf32> -> vector<8x32xf32>
    %43 = arith.addf %27, %42 : vector<8x32xf32>
    %c64 = arith.constant 64 : index
    %c0_25 = arith.constant 0 : index
    %44 = vector.load %arg3[%c64, %c0_25] : memref<328x32xf32, #tpu.memory_space<vmem>>, vector<32x32xf32>
    %c192 = arith.constant 192 : index
    %c0_26 = arith.constant 0 : index
    %45 = vector.load %arg3[%c192, %c0_26] : memref<328x32xf32, #tpu.memory_space<vmem>>, vector<32x32xf32>
    %cst_27 = arith.constant dense<0.000000e+00> : vector<8x32xf32>
    %46 = tpu.matmul %10, %44, %cst_27 {dimension_numbers = #tpu.dot_dimension_numbers<[1], [0], [0], [1], [0, 0, 1, 1], [], []>} : vector<8x32xf32>, vector<32x32xf32>, vector<8x32xf32> -> vector<8x32xf32>
    %cst_28 = arith.constant dense<0.000000e+00> : vector<8x16xf32>
    %47 = tpu.matmul %46, %1, %cst_28 {dimension_numbers = #tpu.dot_dimension_numbers<[1], [1], [0], [0], [0, 0, 1, 0], [], []>} : vector<8x32xf32>, vector<16x32xf32>, vector<8x16xf32> -> vector<8x16xf32>
    %cst_29 = arith.constant dense<0xFF800000> : vector<8xf32>
    %48 = vector.multi_reduction <maximumf>, %47, %cst_29 [1] : vector<8x16xf32> to vector<8xf32>
    %49 = vector.shape_cast %48 : vector<8xf32> to vector<8x1xf32>
    %50 = vector.broadcast %49 : vector<8x1xf32> to vector<8x16xf32>
    %51 = arith.subf %47, %50 : vector<8x16xf32>
    %52 = math.exp %51 : vector<8x16xf32>
    %cst_30 = arith.constant dense<0.000000e+00> : vector<8xf32>
    %53 = vector.multi_reduction <add>, %52, %cst_30 [1] : vector<8x16xf32> to vector<8xf32>
    %54 = vector.shape_cast %53 : vector<8xf32> to vector<8x1xf32>
    %55 = vector.broadcast %54 : vector<8x1xf32> to vector<8x16xf32>
    %56 = arith.divf %52, %55 : vector<8x16xf32>
    %cst_31 = arith.constant dense<0.000000e+00> : vector<16x32xf32>
    %57 = tpu.matmul %1, %45, %cst_31 {dimension_numbers = #tpu.dot_dimension_numbers<[1], [0], [0], [1], [0, 0, 1, 1], [], []>} : vector<16x32xf32>, vector<32x32xf32>, vector<16x32xf32> -> vector<16x32xf32>
    %cst_32 = arith.constant dense<0.000000e+00> : vector<8x32xf32>
    %58 = tpu.matmul %56, %57, %cst_32 {dimension_numbers = #tpu.dot_dimension_numbers<[1], [0], [0], [1], [0, 0, 1, 1], [], []>} : vector<8x16xf32>, vector<16x32xf32>, vector<8x32xf32> -> vector<8x32xf32>
    %59 = arith.addf %43, %58 : vector<8x32xf32>
    %c96 = arith.constant 96 : index
    %c0_33 = arith.constant 0 : index
    %60 = vector.load %arg3[%c96, %c0_33] : memref<328x32xf32, #tpu.memory_space<vmem>>, vector<32x32xf32>
    %c224 = arith.constant 224 : index
    %c0_34 = arith.constant 0 : index
    %61 = vector.load %arg3[%c224, %c0_34] : memref<328x32xf32, #tpu.memory_space<vmem>>, vector<32x32xf32>
    %cst_35 = arith.constant dense<0.000000e+00> : vector<8x32xf32>
    %62 = tpu.matmul %10, %60, %cst_35 {dimension_numbers = #tpu.dot_dimension_numbers<[1], [0], [0], [1], [0, 0, 1, 1], [], []>} : vector<8x32xf32>, vector<32x32xf32>, vector<8x32xf32> -> vector<8x32xf32>
    %cst_36 = arith.constant dense<0.000000e+00> : vector<8x16xf32>
    %63 = tpu.matmul %62, %1, %cst_36 {dimension_numbers = #tpu.dot_dimension_numbers<[1], [1], [0], [0], [0, 0, 1, 0], [], []>} : vector<8x32xf32>, vector<16x32xf32>, vector<8x16xf32> -> vector<8x16xf32>
    %cst_37 = arith.constant dense<0xFF800000> : vector<8xf32>
    %64 = vector.multi_reduction <maximumf>, %63, %cst_37 [1] : vector<8x16xf32> to vector<8xf32>
    %65 = vector.shape_cast %64 : vector<8xf32> to vector<8x1xf32>
    %66 = vector.broadcast %65 : vector<8x1xf32> to vector<8x16xf32>
    %67 = arith.subf %63, %66 : vector<8x16xf32>
    %68 = math.exp %67 : vector<8x16xf32>
    %cst_38 = arith.constant dense<0.000000e+00> : vector<8xf32>
    %69 = vector.multi_reduction <add>, %68, %cst_38 [1] : vector<8x16xf32> to vector<8xf32>
    %70 = vector.shape_cast %69 : vector<8xf32> to vector<8x1xf32>
    %71 = vector.broadcast %70 : vector<8x1xf32> to vector<8x16xf32>
    %72 = arith.divf %68, %71 : vector<8x16xf32>
    %cst_39 = arith.constant dense<0.000000e+00> : vector<16x32xf32>
    %73 = tpu.matmul %1, %61, %cst_39 {dimension_numbers = #tpu.dot_dimension_numbers<[1], [0], [0], [1], [0, 0, 1, 1], [], []>} : vector<16x32xf32>, vector<32x32xf32>, vector<16x32xf32> -> vector<16x32xf32>
    %cst_40 = arith.constant dense<0.000000e+00> : vector<8x32xf32>
    %74 = tpu.matmul %72, %73, %cst_40 {dimension_numbers = #tpu.dot_dimension_numbers<[1], [0], [0], [1], [0, 0, 1, 1], [], []>} : vector<8x16xf32>, vector<16x32xf32>, vector<8x32xf32> -> vector<8x32xf32>
    %75 = arith.addf %59, %74 : vector<8x32xf32>
    %76 = arith.addf %75, %10 : vector<8x32xf32>
    %cst_41 = arith.constant 0.000000e+00 : f32
    %77 = vector.broadcast %cst_41 : f32 to vector<16x32xf32>
    %c0_42 = arith.constant 0 : index
    %c0_43 = arith.constant 0 : index
    %78 = vector.load %arg3[%c0_42, %c0_43] : memref<328x32xf32, #tpu.memory_space<vmem>>, vector<32x32xf32>
    %c128_44 = arith.constant 128 : index
    %c0_45 = arith.constant 0 : index
    %79 = vector.load %arg3[%c128_44, %c0_45] : memref<328x32xf32, #tpu.memory_space<vmem>>, vector<32x32xf32>
    %cst_46 = arith.constant dense<0.000000e+00> : vector<16x32xf32>
    %80 = tpu.matmul %1, %78, %cst_46 {dimension_numbers = #tpu.dot_dimension_numbers<[1], [0], [0], [1], [0, 0, 1, 1], [], []>} : vector<16x32xf32>, vector<32x32xf32>, vector<16x32xf32> -> vector<16x32xf32>
    %cst_47 = arith.constant dense<0.000000e+00> : vector<16x8xf32>
    %81 = tpu.matmul %80, %76, %cst_47 {dimension_numbers = #tpu.dot_dimension_numbers<[1], [1], [0], [0], [0, 0, 1, 0], [], []>} : vector<16x32xf32>, vector<8x32xf32>, vector<16x8xf32> -> vector<16x8xf32>
    %cst_48 = arith.constant dense<0xFF800000> : vector<16xf32>
    %82 = vector.multi_reduction <maximumf>, %81, %cst_48 [1] : vector<16x8xf32> to vector<16xf32>
    %83 = vector.shape_cast %82 : vector<16xf32> to vector<16x1xf32>
    %84 = vector.broadcast %83 : vector<16x1xf32> to vector<16x8xf32>
    %85 = arith.subf %81, %84 : vector<16x8xf32>
    %86 = math.exp %85 : vector<16x8xf32>
    %cst_49 = arith.constant dense<0.000000e+00> : vector<16xf32>
    %87 = vector.multi_reduction <add>, %86, %cst_49 [1] : vector<16x8xf32> to vector<16xf32>
    %88 = vector.shape_cast %87 : vector<16xf32> to vector<16x1xf32>
    %89 = vector.broadcast %88 : vector<16x1xf32> to vector<16x8xf32>
    %90 = arith.divf %86, %89 : vector<16x8xf32>
    %cst_50 = arith.constant dense<0.000000e+00> : vector<8x32xf32>
    %91 = tpu.matmul %76, %79, %cst_50 {dimension_numbers = #tpu.dot_dimension_numbers<[1], [0], [0], [1], [0, 0, 1, 1], [], []>} : vector<8x32xf32>, vector<32x32xf32>, vector<8x32xf32> -> vector<8x32xf32>
    %cst_51 = arith.constant dense<0.000000e+00> : vector<16x32xf32>
    %92 = tpu.matmul %90, %91, %cst_51 {dimension_numbers = #tpu.dot_dimension_numbers<[1], [0], [0], [1], [0, 0, 1, 1], [], []>} : vector<16x8xf32>, vector<8x32xf32>, vector<16x32xf32> -> vector<16x32xf32>
    %93 = arith.addf %77, %92 : vector<16x32xf32>
    %c32_52 = arith.constant 32 : index
    %c0_53 = arith.constant 0 : index
    %94 = vector.load %arg3[%c32_52, %c0_53] : memref<328x32xf32, #tpu.memory_space<vmem>>, vector<32x32xf32>
    %c160_54 = arith.constant 160 : index
    %c0_55 = arith.constant 0 : index
    %95 = vector.load %arg3[%c160_54, %c0_55] : memref<328x32xf32, #tpu.memory_space<vmem>>, vector<32x32xf32>
    %cst_56 = arith.constant dense<0.000000e+00> : vector<16x32xf32>
    %96 = tpu.matmul %1, %94, %cst_56 {dimension_numbers = #tpu.dot_dimension_numbers<[1], [0], [0], [1], [0, 0, 1, 1], [], []>} : vector<16x32xf32>, vector<32x32xf32>, vector<16x32xf32> -> vector<16x32xf32>
    %cst_57 = arith.constant dense<0.000000e+00> : vector<16x8xf32>
    %97 = tpu.matmul %96, %76, %cst_57 {dimension_numbers = #tpu.dot_dimension_numbers<[1], [1], [0], [0], [0, 0, 1, 0], [], []>} : vector<16x32xf32>, vector<8x32xf32>, vector<16x8xf32> -> vector<16x8xf32>
    %cst_58 = arith.constant dense<0xFF800000> : vector<16xf32>
    %98 = vector.multi_reduction <maximumf>, %97, %cst_58 [1] : vector<16x8xf32> to vector<16xf32>
    %99 = vector.shape_cast %98 : vector<16xf32> to vector<16x1xf32>
    %100 = vector.broadcast %99 : vector<16x1xf32> to vector<16x8xf32>
    %101 = arith.subf %97, %100 : vector<16x8xf32>
    %102 = math.exp %101 : vector<16x8xf32>
    %cst_59 = arith.constant dense<0.000000e+00> : vector<16xf32>
    %103 = vector.multi_reduction <add>, %102, %cst_59 [1] : vector<16x8xf32> to vector<16xf32>
    %104 = vector.shape_cast %103 : vector<16xf32> to vector<16x1xf32>
    %105 = vector.broadcast %104 : vector<16x1xf32> to vector<16x8xf32>
    %106 = arith.divf %102, %105 : vector<16x8xf32>
    %cst_60 = arith.constant dense<0.000000e+00> : vector<8x32xf32>
    %107 = tpu.matmul %76, %95, %cst_60 {dimension_numbers = #tpu.dot_dimension_numbers<[1], [0], [0], [1], [0, 0, 1, 1], [], []>} : vector<8x32xf32>, vector<32x32xf32>, vector<8x32xf32> -> vector<8x32xf32>
    %cst_61 = arith.constant dense<0.000000e+00> : vector<16x32xf32>
    %108 = tpu.matmul %106, %107, %cst_61 {dimension_numbers = #tpu.dot_dimension_numbers<[1], [0], [0], [1], [0, 0, 1, 1], [], []>} : vector<16x8xf32>, vector<8x32xf32>, vector<16x32xf32> -> vector<16x32xf32>
    %109 = arith.addf %93, %108 : vector<16x32xf32>
    %c64_62 = arith.constant 64 : index
    %c0_63 = arith.constant 0 : index
    %110 = vector.load %arg3[%c64_62, %c0_63] : memref<328x32xf32, #tpu.memory_space<vmem>>, vector<32x32xf32>
    %c192_64 = arith.constant 192 : index
    %c0_65 = arith.constant 0 : index
    %111 = vector.load %arg3[%c192_64, %c0_65] : memref<328x32xf32, #tpu.memory_space<vmem>>, vector<32x32xf32>
    %cst_66 = arith.constant dense<0.000000e+00> : vector<16x32xf32>
    %112 = tpu.matmul %1, %110, %cst_66 {dimension_numbers = #tpu.dot_dimension_numbers<[1], [0], [0], [1], [0, 0, 1, 1], [], []>} : vector<16x32xf32>, vector<32x32xf32>, vector<16x32xf32> -> vector<16x32xf32>
    %cst_67 = arith.constant dense<0.000000e+00> : vector<16x8xf32>
    %113 = tpu.matmul %112, %76, %cst_67 {dimension_numbers = #tpu.dot_dimension_numbers<[1], [1], [0], [0], [0, 0, 1, 0], [], []>} : vector<16x32xf32>, vector<8x32xf32>, vector<16x8xf32> -> vector<16x8xf32>
    %cst_68 = arith.constant dense<0xFF800000> : vector<16xf32>
    %114 = vector.multi_reduction <maximumf>, %113, %cst_68 [1] : vector<16x8xf32> to vector<16xf32>
    %115 = vector.shape_cast %114 : vector<16xf32> to vector<16x1xf32>
    %116 = vector.broadcast %115 : vector<16x1xf32> to vector<16x8xf32>
    %117 = arith.subf %113, %116 : vector<16x8xf32>
    %118 = math.exp %117 : vector<16x8xf32>
    %cst_69 = arith.constant dense<0.000000e+00> : vector<16xf32>
    %119 = vector.multi_reduction <add>, %118, %cst_69 [1] : vector<16x8xf32> to vector<16xf32>
    %120 = vector.shape_cast %119 : vector<16xf32> to vector<16x1xf32>
    %121 = vector.broadcast %120 : vector<16x1xf32> to vector<16x8xf32>
    %122 = arith.divf %118, %121 : vector<16x8xf32>
    %cst_70 = arith.constant dense<0.000000e+00> : vector<8x32xf32>
    %123 = tpu.matmul %76, %111, %cst_70 {dimension_numbers = #tpu.dot_dimension_numbers<[1], [0], [0], [1], [0, 0, 1, 1], [], []>} : vector<8x32xf32>, vector<32x32xf32>, vector<8x32xf32> -> vector<8x32xf32>
    %cst_71 = arith.constant dense<0.000000e+00> : vector<16x32xf32>
    %124 = tpu.matmul %122, %123, %cst_71 {dimension_numbers = #tpu.dot_dimension_numbers<[1], [0], [0], [1], [0, 0, 1, 1], [], []>} : vector<16x8xf32>, vector<8x32xf32>, vector<16x32xf32> -> vector<16x32xf32>
    %125 = arith.addf %109, %124 : vector<16x32xf32>
    %c96_72 = arith.constant 96 : index
    %c0_73 = arith.constant 0 : index
    %126 = vector.load %arg3[%c96_72, %c0_73] : memref<328x32xf32, #tpu.memory_space<vmem>>, vector<32x32xf32>
    %c224_74 = arith.constant 224 : index
    %c0_75 = arith.constant 0 : index
    %127 = vector.load %arg3[%c224_74, %c0_75] : memref<328x32xf32, #tpu.memory_space<vmem>>, vector<32x32xf32>
    %cst_76 = arith.constant dense<0.000000e+00> : vector<16x32xf32>
    %128 = tpu.matmul %1, %126, %cst_76 {dimension_numbers = #tpu.dot_dimension_numbers<[1], [0], [0], [1], [0, 0, 1, 1], [], []>} : vector<16x32xf32>, vector<32x32xf32>, vector<16x32xf32> -> vector<16x32xf32>
    %cst_77 = arith.constant dense<0.000000e+00> : vector<16x8xf32>
    %129 = tpu.matmul %128, %76, %cst_77 {dimension_numbers = #tpu.dot_dimension_numbers<[1], [1], [0], [0], [0, 0, 1, 0], [], []>} : vector<16x32xf32>, vector<8x32xf32>, vector<16x8xf32> -> vector<16x8xf32>
    %cst_78 = arith.constant dense<0xFF800000> : vector<16xf32>
    %130 = vector.multi_reduction <maximumf>, %129, %cst_78 [1] : vector<16x8xf32> to vector<16xf32>
    %131 = vector.shape_cast %130 : vector<16xf32> to vector<16x1xf32>
    %132 = vector.broadcast %131 : vector<16x1xf32> to vector<16x8xf32>
    %133 = arith.subf %129, %132 : vector<16x8xf32>
    %134 = math.exp %133 : vector<16x8xf32>
    %cst_79 = arith.constant dense<0.000000e+00> : vector<16xf32>
    %135 = vector.multi_reduction <add>, %134, %cst_79 [1] : vector<16x8xf32> to vector<16xf32>
    %136 = vector.shape_cast %135 : vector<16xf32> to vector<16x1xf32>
    %137 = vector.broadcast %136 : vector<16x1xf32> to vector<16x8xf32>
    %138 = arith.divf %134, %137 : vector<16x8xf32>
    %cst_80 = arith.constant dense<0.000000e+00> : vector<8x32xf32>
    %139 = tpu.matmul %76, %127, %cst_80 {dimension_numbers = #tpu.dot_dimension_numbers<[1], [0], [0], [1], [0, 0, 1, 1], [], []>} : vector<8x32xf32>, vector<32x32xf32>, vector<8x32xf32> -> vector<8x32xf32>
    %cst_81 = arith.constant dense<0.000000e+00> : vector<16x32xf32>
    %140 = tpu.matmul %138, %139, %cst_81 {dimension_numbers = #tpu.dot_dimension_numbers<[1], [0], [0], [1], [0, 0, 1, 1], [], []>} : vector<16x8xf32>, vector<8x32xf32>, vector<16x32xf32> -> vector<16x32xf32>
    %141 = arith.addf %125, %140 : vector<16x32xf32>
    %c320 = arith.constant 320 : index
    %c0_82 = arith.constant 0 : index
    %142 = vector.load %arg3[%c320, %c0_82] : memref<328x32xf32, #tpu.memory_space<vmem>>, vector<1x32xf32>
    %c321 = arith.constant 321 : index
    %c0_83 = arith.constant 0 : index
    %143 = vector.load %arg3[%c321, %c0_83] : memref<328x32xf32, #tpu.memory_space<vmem>>, vector<1x32xf32>
    %c322 = arith.constant 322 : index
    %c0_84 = arith.constant 0 : index
    %144 = vector.load %arg3[%c322, %c0_84] : memref<328x32xf32, #tpu.memory_space<vmem>>, vector<1x32xf32>
    %c323 = arith.constant 323 : index
    %c0_85 = arith.constant 0 : index
    %145 = vector.load %arg3[%c323, %c0_85] : memref<328x32xf32, #tpu.memory_space<vmem>>, vector<1x32xf32>
    %c324 = arith.constant 324 : index
    %c0_86 = arith.constant 0 : index
    %146 = vector.load %arg3[%c324, %c0_86] : memref<328x32xf32, #tpu.memory_space<vmem>>, vector<1x32xf32>
    %c325 = arith.constant 325 : index
    %c0_87 = arith.constant 0 : index
    %147 = vector.load %arg3[%c325, %c0_87] : memref<328x32xf32, #tpu.memory_space<vmem>>, vector<1x32xf32>
    %148 = arith.addf %141, %1 : vector<16x32xf32>
    %cst_88 = arith.constant dense<0.000000e+00> : vector<16xf32>
    %149 = vector.multi_reduction <add>, %148, %cst_88 [1] : vector<16x32xf32> to vector<16xf32>
    %150 = vector.shape_cast %149 : vector<16xf32> to vector<16x1xf32>
    %cst_89 = arith.constant 3.200000e+01 : f32
    %151 = vector.broadcast %cst_89 : f32 to vector<16x1xf32>
    %152 = arith.divf %150, %151 : vector<16x1xf32>
    %153 = vector.broadcast %152 : vector<16x1xf32> to vector<16x32xf32>
    %154 = arith.subf %148, %153 : vector<16x32xf32>
    %155 = arith.mulf %154, %154 : vector<16x32xf32>
    %cst_90 = arith.constant dense<0.000000e+00> : vector<16xf32>
    %156 = vector.multi_reduction <add>, %155, %cst_90 [1] : vector<16x32xf32> to vector<16xf32>
    %157 = vector.shape_cast %156 : vector<16xf32> to vector<16x1xf32>
    %cst_91 = arith.constant 3.200000e+01 : f32
    %158 = vector.broadcast %cst_91 : f32 to vector<16x1xf32>
    %159 = arith.divf %157, %158 : vector<16x1xf32>
    %cst_92 = arith.constant 9.99999974E-6 : f32
    %160 = vector.broadcast %cst_92 : f32 to vector<16x1xf32>
    %161 = arith.addf %159, %160 : vector<16x1xf32>
    %162 = math.rsqrt %161 : vector<16x1xf32>
    %163 = vector.broadcast %162 : vector<16x1xf32> to vector<16x32xf32>
    %164 = arith.mulf %154, %163 : vector<16x32xf32>
    %165 = vector.broadcast %144 : vector<1x32xf32> to vector<16x32xf32>
    %166 = arith.mulf %164, %165 : vector<16x32xf32>
    %167 = vector.broadcast %145 : vector<1x32xf32> to vector<16x32xf32>
    %168 = arith.addf %166, %167 : vector<16x32xf32>
    %c256 = arith.constant 256 : index
    %c0_93 = arith.constant 0 : index
    %169 = vector.load %arg3[%c256, %c0_93] : memref<328x32xf32, #tpu.memory_space<vmem>>, vector<32x32xf32>
    %cst_94 = arith.constant dense<0.000000e+00> : vector<16x32xf32>
    %170 = tpu.matmul %168, %169, %cst_94 {dimension_numbers = #tpu.dot_dimension_numbers<[1], [0], [0], [1], [0, 0, 1, 1], [], []>} : vector<16x32xf32>, vector<32x32xf32>, vector<16x32xf32> -> vector<16x32xf32>
    %171 = vector.broadcast %142 : vector<1x32xf32> to vector<16x32xf32>
    %172 = arith.addf %170, %171 : vector<16x32xf32>
    %cst_95 = arith.constant 0.000000e+00 : f32
    %173 = vector.broadcast %cst_95 : f32 to vector<16x32xf32>
    %174 = arith.maximumf %172, %173 : vector<16x32xf32>
    %c288 = arith.constant 288 : index
    %c0_96 = arith.constant 0 : index
    %175 = vector.load %arg3[%c288, %c0_96] : memref<328x32xf32, #tpu.memory_space<vmem>>, vector<32x32xf32>
    %cst_97 = arith.constant dense<0.000000e+00> : vector<16x32xf32>
    %176 = tpu.matmul %174, %175, %cst_97 {dimension_numbers = #tpu.dot_dimension_numbers<[1], [0], [0], [1], [0, 0, 1, 1], [], []>} : vector<16x32xf32>, vector<32x32xf32>, vector<16x32xf32> -> vector<16x32xf32>
    %177 = vector.broadcast %143 : vector<1x32xf32> to vector<16x32xf32>
    %178 = arith.addf %176, %177 : vector<16x32xf32>
    %cst_98 = arith.constant 0.000000e+00 : f32
    %179 = vector.broadcast %cst_98 : f32 to vector<16x32xf32>
    %180 = arith.maximumf %178, %179 : vector<16x32xf32>
    %181 = arith.addf %180, %168 : vector<16x32xf32>
    %cst_99 = arith.constant dense<0.000000e+00> : vector<16xf32>
    %182 = vector.multi_reduction <add>, %181, %cst_99 [1] : vector<16x32xf32> to vector<16xf32>
    %183 = vector.shape_cast %182 : vector<16xf32> to vector<16x1xf32>
    %cst_100 = arith.constant 3.200000e+01 : f32
    %184 = vector.broadcast %cst_100 : f32 to vector<16x1xf32>
    %185 = arith.divf %183, %184 : vector<16x1xf32>
    %186 = vector.broadcast %185 : vector<16x1xf32> to vector<16x32xf32>
    %187 = arith.subf %181, %186 : vector<16x32xf32>
    %188 = arith.mulf %187, %187 : vector<16x32xf32>
    %cst_101 = arith.constant dense<0.000000e+00> : vector<16xf32>
    %189 = vector.multi_reduction <add>, %188, %cst_101 [1] : vector<16x32xf32> to vector<16xf32>
    %190 = vector.shape_cast %189 : vector<16xf32> to vector<16x1xf32>
    %cst_102 = arith.constant 3.200000e+01 : f32
    %191 = vector.broadcast %cst_102 : f32 to vector<16x1xf32>
    %192 = arith.divf %190, %191 : vector<16x1xf32>
    %cst_103 = arith.constant 9.99999974E-6 : f32
    %193 = vector.broadcast %cst_103 : f32 to vector<16x1xf32>
    %194 = arith.addf %192, %193 : vector<16x1xf32>
    %195 = math.rsqrt %194 : vector<16x1xf32>
    %196 = vector.broadcast %195 : vector<16x1xf32> to vector<16x32xf32>
    %197 = arith.mulf %187, %196 : vector<16x32xf32>
    %198 = vector.broadcast %146 : vector<1x32xf32> to vector<16x32xf32>
    %199 = arith.mulf %197, %198 : vector<16x32xf32>
    %200 = vector.broadcast %147 : vector<1x32xf32> to vector<16x32xf32>
    %201 = arith.addf %199, %200 : vector<16x32xf32>
    %c0_104 = arith.constant 0 : index
    %c0_105 = arith.constant 0 : index
    %c0_106 = arith.constant 0 : index
    %202 = vector.load %arg4[%c0_104, %c0_105, %c0_106] : memref<1x16x32xf32, #tpu.memory_space<vmem>>, vector<1x16x32xf32>
    %203 = vector.shape_cast %202 : vector<1x16x32xf32> to vector<16x32xf32>
    %204 = vector.shape_cast %201 : vector<16x32xf32> to vector<1x16x32xf32>
    tpu.vector_store %arg4[%c0_104, %c0_105, %c0_106], %204 {strides = array<i32>} : memref<1x16x32xf32, #tpu.memory_space<vmem>>, vector<1x16x32xf32>,
    return
  }
  func.func @transform_0(%arg0: i32) -> (i32, i32, i32) {
    %c0_i32 = arith.constant 0 : i32
    %c0_i32_0 = arith.constant 0 : i32
    %c0_i32_1 = arith.constant 0 : i32
    return %arg0, %c0_i32, %c0_i32_0 : i32, i32, i32
  }
  func.func @transform_1(%arg0: i32) -> (i32, i32, i32) {
    %c0_i32 = arith.constant 0 : i32
    %c0_i32_0 = arith.constant 0 : i32
    %c0_i32_1 = arith.constant 0 : i32
    return %arg0, %c0_i32, %c0_i32_0 : i32, i32, i32
  }
  func.func @transform_2(%arg0: i32) -> (i32, i32) {
    %c0_i32 = arith.constant 0 : i32
    %c0_i32_0 = arith.constant 0 : i32
    %c0_i32_1 = arith.constant 0 : i32
    return %c0_i32, %c0_i32_0 : i32, i32
  }
  func.func @transform_3(%arg0: i32) -> (i32, i32, i32) {
    %c0_i32 = arith.constant 0 : i32
    %c0_i32_0 = arith.constant 0 : i32
    %c0_i32_1 = arith.constant 0 : i32
    return %arg0, %c0_i32, %c0_i32_0 : i32, i32, i32
  }
}

</mosaic_0001>

<llo_original>
// kernel: gt_layer_forward.1
$region0: #{gt_layer_forward.1}
  #allocation0 [shape = 'u32[]', space=smem, size = 0x4, offset = 0x4, fixed_abs, tag = 'smem constant byte address 0x4 - core index']
  #allocation1 [shape = 'u32[72,128]{1,0:T(1,128)}', space=vmem, size = 0x9000, scoped, tag = 'internal scratch']
  %s0 = inlined_call_operand.vmem [shape: s32[4,8,1], index: 0, kind: input, shape index: {}]
  %s1 = inlined_call_operand.vmem [shape: f32[4,16,32], index: 1, kind: input, shape index: {}]
  %s2 = inlined_call_operand.vmem [shape: f32[328,32], index: 2, kind: input, shape index: {}]
  %s3 = inlined_call_operand.hbm [shape: f32[4,16,32], index: 3, kind: output, shape index: {}]
  %s4 = sld [smem:[#allocation0]]
  $region45: #{gt_layer_forward.1} parent=0
    _
  %s6 = ssub.s32 1, %s4
  %s7 = scalar_select 0, %s6, %s4
  $region1: #{gt_layer_forward.1} parent=0
    #allocation2 [shape = 'u8[16384]{0}', space=vmem, size = 0x4000, scoped, tag = 'output window, operand 0']
    #allocation3 [shape = 's32[2]{0}', space=sflag, size = 0x8, scoped, tag = 'scoped memory for gt_layer_forward.1']
    %8 = vsyncpa [#allocation3], 0
    %s9 = scalar_lea.sflag [#allocation3], 1
    %10 = vsyncpa %s9, 0
    loop: start=0, step=1, limit=6
    $region2: #{gt_layer_forward.1} parent=1 // loop_pre_header
      _
    $region3: #{gt_layer_forward.1} parent=1 // loop_header
      %s12 = sphi 0, %s16
      %p13 = scmp.ge.s32.totalorder %s12, 6
      %s22 = sphi 0, %s24
      %s25 = sphi 0, %s22
      %s26 = sphi 0, %s25
      %s42 = sphi 0, %s26
      %s48 = sphi 0, %s50
      %s51 = sphi 0, %s48
      %s52 = sphi 0, %s51
      %s68 = sphi 0, %s52
      %s72 = sphi 0, %s72
      %s74 = sphi 0, %s72
      %s75 = sphi 0, %s74
      %s89 = sphi 0, %s75
      %s95 = sphi 0, %s97
      %s98 = sphi 0, %s95
      %s99 = sphi 0, %s98
      %s115 = sphi 0, %s99
    $region4: #{gt_layer_forward.1} parent=1 // loop_header_branch
      %15 = sbr.rel (%p13) target = $region8
    $region5: #{gt_layer_forward.1} parent=1 // loop_body
      %s17 = ssub.s32 %s12, 1
      %s18 = ssub.s32 %s12, 2
      %s19 = sadd.s32 %s12, 1
      %s20 = ssub.s32 %s12, %s19
      %p21 = scmp.eq.s32.totalorder %s20, 0
      %s23 = sadd.s32 %s22, 1
      %s24 = scalar_select %p21, %s22, %s23
      %p27 = pneg %p21
      %p28 = scmp.eq.s32.totalorder %s12, 3
      %p29 = por %p27, %p28
      %p30 = scmp.ne.s32.totalorder %s22, %s25
      %p31 = scmp.eq.s32.totalorder %s12, 0
      %p32 = por %p30, %p31
      %p33 = scmp.ne.s32.totalorder %s22, %s25
      %p34 = scmp.eq.s32.totalorder %s17, 3
      %p35 = por %p33, %p34
      %p36 = scmp.ne.s32.totalorder %s25, %s26
      %p37 = scmp.eq.s32.totalorder %s17, 0
      %p38 = por %p36, %p37
      %p39 = scmp.ne.s32.totalorder %s25, %s26
      %p40 = scmp.eq.s32.totalorder %s18, 3
      %p41 = por %p39, %p40
      %p43 = scmp.ne.s32.totalorder %s26, %s42
      %p44 = scmp.eq.s32.totalorder %s18, 0
      %p45 = por %p43, %p44
      %s46 = ssub.s32 %s12, %s19
      %p47 = scmp.eq.s32.totalorder %s46, 0
      %s49 = sadd.s32 %s48, 1
      %s50 = scalar_select %p47, %s48, %s49
      %p53 = pneg %p47
      %p54 = scmp.eq.s32.totalorder %s12, 3
      %p55 = por %p53, %p54
      %p56 = scmp.ne.s32.totalorder %s48, %s51
      %p57 = scmp.eq.s32.totalorder %s12, 0
      %p58 = por %p56, %p57
      %p59 = scmp.ne.s32.totalorder %s48, %s51
      %p60 = scmp.eq.s32.totalorder %s17, 3
      %p61 = por %p59, %p60
      %p62 = scmp.ne.s32.totalorder %s51, %s52
      %p63 = scmp.eq.s32.totalorder %s17, 0
      %p64 = por %p62, %p63
      %p65 = scmp.ne.s32.totalorder %s51, %s52
      %p66 = scmp.eq.s32.totalorder %s18, 3
      %p67 = por %p65, %p66
      %p69 = scmp.ne.s32.totalorder %s52, %s68
      %p70 = scmp.eq.s32.totalorder %s18, 0
      %p71 = por %p69, %p70
      %s73 = sadd.s32 %s72, 1
      %p76 = scmp.eq.s32.totalorder %s12, 3
      %p77 = scmp.ne.s32.totalorder %s72, %s74
      %p78 = scmp.eq.s32.totalorder %s12, 0
      %p79 = por %p77, %p78
      %p80 = scmp.ne.s32.totalorder %s72, %s74
      %p81 = scmp.eq.s32.totalorder %s17, 3
      %p82 = por %p80, %p81
      %p83 = scmp.ne.s32.totalorder %s74, %s75
      %p84 = scmp.eq.s32.totalorder %s17, 0
      %p85 = por %p83, %p84
      %p86 = scmp.ne.s32.totalorder %s74, %s75
      %p87 = scmp.eq.s32.totalorder %s18, 3
      %p88 = por %p86, %p87
      %p90 = scmp.ne.s32.totalorder %s75, %s89
      %p91 = scmp.eq.s32.totalorder %s18, 0
      %p92 = por %p90, %p91
      %s93 = ssub.s32 %s12, %s19
      %p94 = scmp.eq.s32.totalorder %s93, 0
      %s96 = sadd.s32 %s95, 1
      %s97 = scalar_select %p94, %s95, %s96
      %p100 = pneg %p94
      %p101 = scmp.eq.s32.totalorder %s12, 3
      %p102 = por %p100, %p101
      %p103 = scmp.ne.s32.totalorder %s95, %s98
      %p104 = scmp.eq.s32.totalorder %s12, 0
      %p105 = por %p103, %p104
      %p106 = scmp.ne.s32.totalorder %s95, %s98
      %p107 = scmp.eq.s32.totalorder %s17, 3
      %p108 = por %p106, %p107
      %p109 = scmp.ne.s32.totalorder %s98, %s99
      %p110 = scmp.eq.s32.totalorder %s17, 0
      %p111 = por %p109, %p110
      %p112 = scmp.ne.s32.totalorder %s98, %s99
      %p113 = scmp.eq.s32.totalorder %s18, 3
      %p114 = por %p112, %p113
      %p116 = scmp.ne.s32.totalorder %s99, %s115
      %p117 = scmp.eq.s32.totalorder %s18, 0
      %p118 = por %p116, %p117
      %p119 = scmp.le.s32.totalorder 1, %s12
      %p120 = scmp.lt.s32.totalorder %s12, 5
      %p121 = pnand %p119, %p120
      %p122 = pneg %p121
      // Predicated region
      $region9: #{gt_layer_forward.1} parent=5 // pred_check
        _
      $region10: #{gt_layer_forward.1} parent=5 // pred_check_branch
        %124 = sbr.rel (%p121) target = $region12
      $region11: #{gt_layer_forward.1} parent=5 // pred_region
        %s125 = ssub.s32 %s12, 1
        // Predicated region
        $region13: #{gt_layer_forward.1} parent=11 // pred_check
          %p126 = pneg %p85
        $region14: #{gt_layer_forward.1} parent=11 // pred_check_branch
          %128 = sbr.rel (%p126) target = $region16
        $region15: #{gt_layer_forward.1} parent=11 // pred_region
          _
        $region16: #{gt_layer_forward.1} parent=11 // pred_fallthru
          _
      $region12: #{gt_layer_forward.1} parent=5 // pred_fallthru
        _
      %p129 = scmp.lt.s32.totalorder %s12, 4
      // Predicated region
      $region17: #{gt_layer_forward.1} parent=5 // pred_check
        %p130 = pneg %p129
      $region18: #{gt_layer_forward.1} parent=5 // pred_check_branch
        %132 = sbr.rel (%p130) target = $region20
      $region19: #{gt_layer_forward.1} parent=5 // pred_region
        // Predicated region
        $region21: #{gt_layer_forward.1} parent=19 // pred_check
          %p133 = pneg %p32
        $region22: #{gt_layer_forward.1} parent=19 // pred_check_branch
          %135 = sbr.rel (%p133) target = $region24
        $region23: #{gt_layer_forward.1} parent=19 // pred_region
          %p136 = scmp.lt.s32.totalorder %s12, 3
          %s137 = scalar_select %p136, %s12, 3
          %s138 = smul.addr %s137, 8
          %s139 = scalar_lea.vmem %s0, %s138
        $region24: #{gt_layer_forward.1} parent=19 // pred_fallthru
          _
        // Predicated region
        $region25: #{gt_layer_forward.1} parent=19 // pred_check
          %p140 = pneg %p58
        $region26: #{gt_layer_forward.1} parent=19 // pred_check_branch
          %142 = sbr.rel (%p140) target = $region28
        $region27: #{gt_layer_forward.1} parent=19 // pred_region
          %p143 = scmp.lt.s32.totalorder %s12, 3
          %s144 = scalar_select %p143, %s12, 3
          %s145 = smul.addr %s144, 2
          %s146 = smul.addr %s145, 8
          %s147 = scalar_lea.vmem %s1, %s146
        $region28: #{gt_layer_forward.1} parent=19 // pred_fallthru
          _
      $region20: #{gt_layer_forward.1} parent=5 // pred_fallthru
        _
      %p148 = scmp.le.s32.totalorder 1, %s12
      %p149 = scmp.lt.s32.totalorder %s12, 5
      %p150 = pnand %p148, %p149
      %p151 = pneg %p150
      // Predicated region
      $region29: #{gt_layer_forward.1} parent=5 // pred_check
        _
      $region30: #{gt_layer_forward.1} parent=5 // pred_check_branch
        %153 = sbr.rel (%p150) target = $region32
      $region31: #{gt_layer_forward.1} parent=5 // pred_region
        %s154 = ssub.s32 %s12, 1
        %p155 = scmp.lt.s32.totalorder %s17, 3
        %s156 = scalar_select %p155, %s17, 3
        %s157 = smul.addr %s156, 8
        %s158 = scalar_lea.vmem %s0, %s157
        %p159 = pneg %p38
        %p160 = pneg %p35
        %p161 = scmp.lt.s32.totalorder %s17, 3
        %s162 = scalar_select %p161, %s17, 3
        %s163 = smul.addr %s162, 2
        %s164 = smul.addr %s163, 8
        %s165 = scalar_lea.vmem %s1, %s164
        %p166 = pneg %p64
        %p167 = pneg %p61
        %p168 = pneg %p85
        %p169 = pneg %p82
        %p170 = pneg %p111
        %p171 = pneg %p108
        %s172 = sand.u32 %s98, 1
        %s173 = scalar_lea.sflag [#allocation3], %s172
        %s174 = sand.u32 %s98, 1
        %s175 = smul.addr %s174, 16
        %s176 = scalar_lea.vmem [#allocation2], %s175
        %p177 = scmp.lt.s32.totalorder %s17, 3
        %s178 = scalar_select %p177, %s17, 3
        %s179 = smul.addr %s178, 8
        %s180 = scalar_lea.vmem %s0, %s179
        %p181 = scmp.lt.s32.totalorder %s17, 3
        %s182 = scalar_select %p181, %s17, 3
        %s183 = smul.addr %s182, 2
        %s184 = smul.addr %s183, 8
        %s185 = scalar_lea.vmem %s1, %s184
        %v186 = vld [vmem:[%s185] sm:$0xff]
        %v187 = vld [vmem:[%s185 + $0x8] sm:$0xff]
        %v188 = vld [vmem:[%s180] sm:$0xff]
        %v189 = vlaneseq
        %v190 = vand.u32 %v189, 127
        %191 = vset.pattern.permute.xlu0 0
        %192 = vperm.xlu0 %191, %v188
        %v193 = vpop.permute.xlu0 %192
        %vm194 = vcmp.eq.s32.totalorder %v190, %v193
        %v195 = vsel %vm194, 1.0, 0.0
        %vm196 = vcmask 130048
        %v198 = vsel %vm196, %v195, 0
        %200 = vmatpush.msra.mxu0 0.0
        %201 = vmatpush.msra.mxu0 0.0
        %202 = vmatpush.msra.mxu0 0.0
        %203 = vmatpush.msra.mxu0 0.0
        %204 = vmatpush.msra.mxu0 0.0
        %205 = vmatpush.msra.mxu0 0.0
        %206 = vmatpush.msra.mxu0 0.0
        %207 = vmatpush.msra.mxu0 0.0
        %208 = vmatpush.msra.mxu0 0.0
        %209 = vmatpush.msra.mxu0 0.0
        %210 = vmatpush.msra.mxu0 0.0
        %211 = vmatpush.msra.mxu0 0.0
        %212 = vmatpush.msra.mxu0 0.0
        %213 = vmatpush.msra.mxu0 0.0
        %214 = vmatpush.msra.mxu0 %v187
        %215 = vmatpush.msra.mxu0 %v186
        %216 = vmatmul.f32.gmra.mxu0 %v198
        %v217 = vpop.f32.mrf.mxu0
        %v218 = vadd.f32 0.0, %v217
        %219 = vdwg.mxu0
        %v220 = vld [vmem:[%s2] sm:$0xff]
        %v221 = vld [vmem:[%s2 + $0x8] sm:$0xff]
        %v222 = vld [vmem:[%s2 + $0x10] sm:$0xff]
        %v223 = vld [vmem:[%s2 + $0x18] sm:$0xff]
        %v224 = vld [vmem:[%s2 + $0x80] sm:$0xff]
        %v225 = vld [vmem:[%s2 + $0x88] sm:$0xff]
        %v226 = vld [vmem:[%s2 + $0x90] sm:$0xff]
        %v227 = vld [vmem:[%s2 + $0x98] sm:$0xff]
        %vm228 = vcmask 261120
        %v230 = vsel %vm228, %v218, 0
        %232 = vmatpush.msra.mxu0 0.0
        %233 = vmatpush.msra.mxu0 0.0
        %234 = vmatpush.msra.mxu0 0.0
        %235 = vmatpush.msra.mxu0 0.0
        %236 = vmatpush.msra.mxu0 0.0
        %237 = vmatpush.msra.mxu0 0.0
        %238 = vmatpush.msra.mxu0 0.0
        %239 = vmatpush.msra.mxu0 0.0
        %240 = vmatpush.msra.mxu0 0.0
        %241 = vmatpush.msra.mxu0 0.0
        %242 = vmatpush.msra.mxu0 0.0
        %243 = vmatpush.msra.mxu0 0.0
        %244 = vmatpush.msra.mxu0 %v223
        %245 = vmatpush.msra.mxu0 %v222
        %246 = vmatpush.msra.mxu0 %v221
        %247 = vmatpush.msra.mxu0 %v220
        %248 = vmatmul.f32.gmra.mxu0 %v230
        %v249 = vpop.f32.mrf.mxu0
        %v250 = vadd.f32 0.0, %v249
        %251 = vdwg.mxu0
        %v253 = vsel %vm228, %v250, 0
        %v256 = vsel %vm228, %v186, 0
        %v259 = vsel %vm228, %v187, 0
        %261 = vmatpush.xpose.msra.mxu0 0.0
        %262 = vmatpush.xpose.msra.mxu0 0.0
        %263 = vmatpush.xpose.msra.mxu0 0.0
        %264 = vmatpush.xpose.msra.mxu0 0.0
        %265 = vmatpush.xpose.msra.mxu0 0.0
        %266 = vmatpush.xpose.msra.mxu0 0.0
        %267 = vmatpush.xpose.msra.mxu0 0.0
        %268 = vmatpush.xpose.msra.mxu0 0.0
        %269 = vmatpush.xpose.msra.mxu0 0.0
        %270 = vmatpush.xpose.msra.mxu0 0.0
        %271 = vmatpush.xpose.msra.mxu0 0.0
        %272 = vmatpush.xpose.msra.mxu0 0.0
        %273 = vmatpush.xpose.msra.mxu0 0.0
        %274 = vmatpush.xpose.msra.mxu0 0.0
        %275 = vmatpush.xpose.msra.mxu0 %v259
        %276 = vmatpush.xpose.msra.mxu0 %v256
        %277 = vmatmul.f32.gmra.mxu0 %v253
        %v278 = vpop.f32.mrf.mxu0
        %v279 = vadd.f32 0.0, %v278
        %280 = vdwg.mxu0
        %v281 = vsel %vm196, %v279, -inf
        %282 = vmax.xlane.f32.xlu0 %v281
        %v283 = vpop.xlane.xlu0 %282
        %v284 = vsub.f32 %v279, %v283
        %v285 = vmul.f32 %v284, 1.442695
        %v286 = vpow.pop %v285
        %v287 = vsel %vm196, %v286, 0.0
        %288 = vadd.xlane.f32.xlu0 %v287
        %v289 = vpop.xlane.xlu0 %288
        %v290 = vrcp.pop %v289
        %v291 = vmul.f32 %v289, %v290
        %v292 = vsub.f32 1.0, %v291
        %v293 = vmul.f32 %v290, %v292
        %v294 = vadd.f32 %v290, %v293
        %vm295 = vweird.f32 %v289
        %vm296 = vweird.f32 %v290
        %vm297 = vmor %vm295, %vm296
        %v298 = vsel %vm297, %v290, %v294
        %v299 = vand.u32 2147483647, %v289
        %vm300 = vcmp.eq.f32.partialorder %v299, 8.507059e+37
        %v301 = vand.u32 %v289, 2147483648
        %v302 = vor.u32 1.1754944e-38, %v301
        %v303 = vsel %vm300, %v302, %v298
        %v304 = vmul.f32 %v286, %v303
        %305 = vmatpush.msra.mxu0 0.0
        %306 = vmatpush.msra.mxu0 0.0
        %307 = vmatpush.msra.mxu0 0.0
        %308 = vmatpush.msra.mxu0 0.0
        %309 = vmatpush.msra.mxu0 0.0
        %310 = vmatpush.msra.mxu0 0.0
        %311 = vmatpush.msra.mxu0 0.0
        %312 = vmatpush.msra.mxu0 0.0
        %313 = vmatpush.msra.mxu0 0.0
        %314 = vmatpush.msra.mxu0 0.0
        %315 = vmatpush.msra.mxu0 0.0
        %316 = vmatpush.msra.mxu0 0.0
        %317 = vmatpush.msra.mxu0 %v227
        %318 = vmatpush.msra.mxu0 %v226
        %319 = vmatpush.msra.mxu0 %v225
        %320 = vmatpush.msra.mxu0 %v224
        %321 = vmatmul.f32.gmra.mxu0 %v256
        %v322 = vpop.f32.mrf.mxu0
        %v323 = vadd.f32 0.0, %v322
        %324 = vmatmul.f32.gmra.mxu0 %v259
        %v325 = vpop.f32.mrf.mxu0
        %v326 = vadd.f32 0.0, %v325
        %327 = vdwg.mxu0
        %v328 = vld [vmem:[%s2 + $0x20] sm:$0xff]
        %v329 = vld [vmem:[%s2 + $0x28] sm:$0xff]
        %v330 = vld [vmem:[%s2 + $0x30] sm:$0xff]
        %v331 = vld [vmem:[%s2 + $0x38] sm:$0xff]
        %v332 = vld [vmem:[%s2 + $0xa0] sm:$0xff]
        %v333 = vld [vmem:[%s2 + $0xa8] sm:$0xff]
        %v334 = vld [vmem:[%s2 + $0xb0] sm:$0xff]
        %v335 = vld [vmem:[%s2 + $0xb8] sm:$0xff]
        %336 = vmatpush.msra.mxu0 0.0
        %337 = vmatpush.msra.mxu0 0.0
        %338 = vmatpush.msra.mxu0 0.0
        %339 = vmatpush.msra.mxu0 0.0
        %340 = vmatpush.msra.mxu0 0.0
        %341 = vmatpush.msra.mxu0 0.0
        %342 = vmatpush.msra.mxu0 0.0
        %343 = vmatpush.msra.mxu0 0.0
        %344 = vmatpush.msra.mxu0 0.0
        %345 = vmatpush.msra.mxu0 0.0
        %346 = vmatpush.msra.mxu0 0.0
        %347 = vmatpush.msra.mxu0 0.0
        %348 = vmatpush.msra.mxu0 %v331
        %349 = vmatpush.msra.mxu0 %v330
        %350 = vmatpush.msra.mxu0 %v329
        %351 = vmatpush.msra.mxu0 %v328
        %352 = vmatmul.f32.gmra.mxu0 %v230
        %v353 = vpop.f32.mrf.mxu0
        %v354 = vadd.f32 0.0, %v353
        %355 = vdwg.mxu0
        %v357 = vsel %vm228, %v354, 0
        %359 = vmatpush.xpose.msra.mxu0 0.0
        %360 = vmatpush.xpose.msra.mxu0 0.0
        %361 = vmatpush.xpose.msra.mxu0 0.0
        %362 = vmatpush.xpose.msra.mxu0 0.0
        %363 = vmatpush.xpose.msra.mxu0 0.0
        %364 = vmatpush.xpose.msra.mxu0 0.0
        %365 = vmatpush.xpose.msra.mxu0 0.0
        %366 = vmatpush.xpose.msra.mxu0 0.0
        %367 = vmatpush.xpose.msra.mxu0 0.0
        %368 = vmatpush.xpose.msra.mxu0 0.0
        %369 = vmatpush.xpose.msra.mxu0 0.0
        %370 = vmatpush.xpose.msra.mxu0 0.0
        %371 = vmatpush.xpose.msra.mxu0 0.0
        %372 = vmatpush.xpose.msra.mxu0 0.0
        %373 = vmatpush.xpose.msra.mxu0 %v259
        %374 = vmatpush.xpose.msra.mxu0 %v256
        %375 = vmatmul.f32.gmra.mxu0 %v357
        %v376 = vpop.f32.mrf.mxu0
        %v377 = vadd.f32 0.0, %v376
        %378 = vdwg.mxu0
        %v379 = vsel %vm196, %v377, -inf
        %380 = vmax.xlane.f32.xlu0 %v379
        %v381 = vpop.xlane.xlu0 %380
        %v382 = vsub.f32 %v377, %v381
        %v383 = vmul.f32 %v382, 1.442695
        %v384 = vpow.pop %v383
        %v385 = vsel %vm196, %v384, 0.0
        %386 = vadd.xlane.f32.xlu0 %v385
        %v387 = vpop.xlane.xlu0 %386
        %v388 = vrcp.pop %v387
        %v389 = vmul.f32 %v387, %v388
        %v390 = vsub.f32 1.0, %v389
        %v391 = vmul.f32 %v388, %v390
        %v392 = vadd.f32 %v388, %v391
        %vm393 = vweird.f32 %v387
        %vm394 = vweird.f32 %v388
        %vm395 = vmor %vm393, %vm394
        %v396 = vsel %vm395, %v388, %v392
        %v397 = vand.u32 2147483647, %v387
        %vm398 = vcmp.eq.f32.partialorder %v397, 8.507059e+37
        %v399 = vand.u32 %v387, 2147483648
        %v400 = vor.u32 1.1754944e-38, %v399
        %v401 = vsel %vm398, %v400, %v396
        %v402 = vmul.f32 %v384, %v401
        %403 = vmatpush.msra.mxu0 0.0
        %404 = vmatpush.msra.mxu0 0.0
        %405 = vmatpush.msra.mxu0 0.0
        %406 = vmatpush.msra.mxu0 0.0
        %407 = vmatpush.msra.mxu0 0.0
        %408 = vmatpush.msra.mxu0 0.0
        %409 = vmatpush.msra.mxu0 0.0
        %410 = vmatpush.msra.mxu0 0.0
        %411 = vmatpush.msra.mxu0 0.0
        %412 = vmatpush.msra.mxu0 0.0
        %413 = vmatpush.msra.mxu0 0.0
        %414 = vmatpush.msra.mxu0 0.0
        %415 = vmatpush.msra.mxu0 %v335
        %416 = vmatpush.msra.mxu0 %v334
        %417 = vmatpush.msra.mxu0 %v333
        %418 = vmatpush.msra.mxu0 %v332
        %419 = vmatmul.f32.gmra.mxu0 %v256
        %v420 = vpop.f32.mrf.mxu0
        %v421 = vadd.f32 0.0, %v420
        %422 = vmatmul.f32.gmra.mxu0 %v259
        %v423 = vpop.f32.mrf.mxu0
        %v424 = vadd.f32 0.0, %v423
        %425 = vdwg.mxu0
        %v427 = vsel %vm196, %v402, 0
        %429 = vmatpush.msra.mxu0 0.0
        %430 = vmatpush.msra.mxu0 0.0
        %431 = vmatpush.msra.mxu0 0.0
        %432 = vmatpush.msra.mxu0 0.0
        %433 = vmatpush.msra.mxu0 0.0
        %434 = vmatpush.msra.mxu0 0.0
        %435 = vmatpush.msra.mxu0 0.0
        %436 = vmatpush.msra.mxu0 0.0
        %437 = vmatpush.msra.mxu0 0.0
        %438 = vmatpush.msra.mxu0 0.0
        %439 = vmatpush.msra.mxu0 0.0
        %440 = vmatpush.msra.mxu0 0.0
        %441 = vmatpush.msra.mxu0 0.0
        %442 = vmatpush.msra.mxu0 0.0
        %443 = vmatpush.msra.mxu0 %v424
        %444 = vmatpush.msra.mxu0 %v421
        %445 = vmatmul.f32.gmra.mxu0 %v427
        %v446 = vpop.f32.mrf.mxu0
        %v447 = vadd.f32 0.0, %v446
        %448 = vdwg.mxu0
        %v450 = vsel %vm196, %v304, 0
        %452 = vmatpush.msra.mxu0 0.0
        %453 = vmatpush.msra.mxu0 0.0
        %454 = vmatpush.msra.mxu0 0.0
        %455 = vmatpush.msra.mxu0 0.0
        %456 = vmatpush.msra.mxu0 0.0
        %457 = vmatpush.msra.mxu0 0.0
        %458 = vmatpush.msra.mxu0 0.0
        %459 = vmatpush.msra.mxu0 0.0
        %460 = vmatpush.msra.mxu0 0.0
        %461 = vmatpush.msra.mxu0 0.0
        %462 = vmatpush.msra.mxu0 0.0
        %463 = vmatpush.msra.mxu0 0.0
        %464 = vmatpush.msra.mxu0 0.0
        %465 = vmatpush.msra.mxu0 0.0
        %466 = vmatpush.msra.mxu0 %v326
        %467 = vmatpush.msra.mxu0 %v323
        %468 = vmatmul.f32.gmra.mxu0 %v450
        %v469 = vpop.f32.mrf.mxu0
        %v470 = vadd.f32 %v447, %v469
        %471 = vdwg.mxu0
        %v472 = vld [vmem:[%s2 + $0x40] sm:$0xff]
        %v473 = vld [vmem:[%s2 + $0x48] sm:$0xff]
        %v474 = vld [vmem:[%s2 + $0x50] sm:$0xff]
        %v475 = vld [vmem:[%s2 + $0x58] sm:$0xff]
        %v476 = vld [vmem:[%s2 + $0xc0] sm:$0xff]
        %v477 = vld [vmem:[%s2 + $0xc8] sm:$0xff]
        %v478 = vld [vmem:[%s2 + $0xd0] sm:$0xff]
        %v479 = vld [vmem:[%s2 + $0xd8] sm:$0xff]
        %480 = vmatpush.msra.mxu0 0.0
        %481 = vmatpush.msra.mxu0 0.0
        %482 = vmatpush.msra.mxu0 0.0
        %483 = vmatpush.msra.mxu0 0.0
        %484 = vmatpush.msra.mxu0 0.0
        %485 = vmatpush.msra.mxu0 0.0
        %486 = vmatpush.msra.mxu0 0.0
        %487 = vmatpush.msra.mxu0 0.0
        %488 = vmatpush.msra.mxu0 0.0
        %489 = vmatpush.msra.mxu0 0.0
        %490 = vmatpush.msra.mxu0 0.0
        %491 = vmatpush.msra.mxu0 0.0
        %492 = vmatpush.msra.mxu0 %v475
        %493 = vmatpush.msra.mxu0 %v474
        %494 = vmatpush.msra.mxu0 %v473
        %495 = vmatpush.msra.mxu0 %v472
        %496 = vmatmul.f32.gmra.mxu0 %v230
        %v497 = vpop.f32.mrf.mxu0
        %v498 = vadd.f32 0.0, %v497
        %499 = vdwg.mxu0
        %v501 = vsel %vm228, %v498, 0
        %503 = vmatpush.xpose.msra.mxu0 0.0
        %504 = vmatpush.xpose.msra.mxu0 0.0
        %505 = vmatpush.xpose.msra.mxu0 0.0
        %506 = vmatpush.xpose.msra.mxu0 0.0
        %507 = vmatpush.xpose.msra.mxu0 0.0
        %508 = vmatpush.xpose.msra.mxu0 0.0
        %509 = vmatpush.xpose.msra.mxu0 0.0
        %510 = vmatpush.xpose.msra.mxu0 0.0
        %511 = vmatpush.xpose.msra.mxu0 0.0
        %512 = vmatpush.xpose.msra.mxu0 0.0
        %513 = vmatpush.xpose.msra.mxu0 0.0
        %514 = vmatpush.xpose.msra.mxu0 0.0
        %515 = vmatpush.xpose.msra.mxu0 0.0
        %516 = vmatpush.xpose.msra.mxu0 0.0
        %517 = vmatpush.xpose.msra.mxu0 %v259
        %518 = vmatpush.xpose.msra.mxu0 %v256
        %519 = vmatmul.f32.gmra.mxu0 %v501
        %v520 = vpop.f32.mrf.mxu0
        %v521 = vadd.f32 0.0, %v520
        %522 = vdwg.mxu0
        %v523 = vsel %vm196, %v521, -inf
        %524 = vmax.xlane.f32.xlu0 %v523
        %v525 = vpop.xlane.xlu0 %524
        %v526 = vsub.f32 %v521, %v525
        %v527 = vmul.f32 %v526, 1.442695
        %v528 = vpow.pop %v527
        %v529 = vsel %vm196, %v528, 0.0
        %530 = vadd.xlane.f32.xlu0 %v529
        %v531 = vpop.xlane.xlu0 %530
        %v532 = vrcp.pop %v531
        %v533 = vmul.f32 %v531, %v532
        %v534 = vsub.f32 1.0, %v533
        %v535 = vmul.f32 %v532, %v534
        %v536 = vadd.f32 %v532, %v535
        %vm537 = vweird.f32 %v531
        %vm538 = vweird.f32 %v532
        %vm539 = vmor %vm537, %vm538
        %v540 = vsel %vm539, %v532, %v536
        %v541 = vand.u32 2147483647, %v531
        %vm542 = vcmp.eq.f32.partialorder %v541, 8.507059e+37
        %v543 = vand.u32 %v531, 2147483648
        %v544 = vor.u32 1.1754944e-38, %v543
        %v545 = vsel %vm542, %v544, %v540
        %v546 = vmul.f32 %v528, %v545
        %547 = vmatpush.msra.mxu0 0.0
        %548 = vmatpush.msra.mxu0 0.0
        %549 = vmatpush.msra.mxu0 0.0
        %550 = vmatpush.msra.mxu0 0.0
        %551 = vmatpush.msra.mxu0 0.0
        %552 = vmatpush.msra.mxu0 0.0
        %553 = vmatpush.msra.mxu0 0.0
        %554 = vmatpush.msra.mxu0 0.0
        %555 = vmatpush.msra.mxu0 0.0
        %556 = vmatpush.msra.mxu0 0.0
        %557 = vmatpush.msra.mxu0 0.0
        %558 = vmatpush.msra.mxu0 0.0
        %559 = vmatpush.msra.mxu0 %v479
        %560 = vmatpush.msra.mxu0 %v478
        %561 = vmatpush.msra.mxu0 %v477
        %562 = vmatpush.msra.mxu0 %v476
        %563 = vmatmul.f32.gmra.mxu0 %v256
        %v564 = vpop.f32.mrf.mxu0
        %v565 = vadd.f32 0.0, %v564
        %566 = vmatmul.f32.gmra.mxu0 %v259
        %v567 = vpop.f32.mrf.mxu0
        %v568 = vadd.f32 0.0, %v567
        %569 = vdwg.mxu0
        %v571 = vsel %vm196, %v546, 0
        %573 = vmatpush.msra.mxu0 0.0
        %574 = vmatpush.msra.mxu0 0.0
        %575 = vmatpush.msra.mxu0 0.0
        %576 = vmatpush.msra.mxu0 0.0
        %577 = vmatpush.msra.mxu0 0.0
        %578 = vmatpush.msra.mxu0 0.0
        %579 = vmatpush.msra.mxu0 0.0
        %580 = vmatpush.msra.mxu0 0.0
        %581 = vmatpush.msra.mxu0 0.0
        %582 = vmatpush.msra.mxu0 0.0
        %583 = vmatpush.msra.mxu0 0.0
        %584 = vmatpush.msra.mxu0 0.0
        %585 = vmatpush.msra.mxu0 0.0
        %586 = vmatpush.msra.mxu0 0.0
        %587 = vmatpush.msra.mxu0 %v568
        %588 = vmatpush.msra.mxu0 %v565
        %589 = vmatmul.f32.gmra.mxu0 %v571
        %v590 = vpop.f32.mrf.mxu0
        %v591 = vadd.f32 0.0, %v590
        %592 = vdwg.mxu0
        %v593 = vadd.f32 %v470, %v591
        %v594 = vld [vmem:[%s2 + $0x60] sm:$0xff]
        %v595 = vld [vmem:[%s2 + $0x68] sm:$0xff]
        %v596 = vld [vmem:[%s2 + $0x70] sm:$0xff]
        %v597 = vld [vmem:[%s2 + $0x78] sm:$0xff]
        %v598 = vld [vmem:[%s2 + $0xe0] sm:$0xff]
        %v599 = vld [vmem:[%s2 + $0xe8] sm:$0xff]
        %v600 = vld [vmem:[%s2 + $0xf0] sm:$0xff]
        %v601 = vld [vmem:[%s2 + $0xf8] sm:$0xff]
        %602 = vmatpush.msra.mxu0 0.0
        %603 = vmatpush.msra.mxu0 0.0
        %604 = vmatpush.msra.mxu0 0.0
        %605 = vmatpush.msra.mxu0 0.0
        %606 = vmatpush.msra.mxu0 0.0
        %607 = vmatpush.msra.mxu0 0.0
        %608 = vmatpush.msra.mxu0 0.0
        %609 = vmatpush.msra.mxu0 0.0
        %610 = vmatpush.msra.mxu0 0.0
        %611 = vmatpush.msra.mxu0 0.0
        %612 = vmatpush.msra.mxu0 0.0
        %613 = vmatpush.msra.mxu0 0.0
        %614 = vmatpush.msra.mxu0 %v597
        %615 = vmatpush.msra.mxu0 %v596
        %616 = vmatpush.msra.mxu0 %v595
        %617 = vmatpush.msra.mxu0 %v594
        %618 = vmatmul.f32.gmra.mxu0 %v230
        %v619 = vpop.f32.mrf.mxu0
        %v620 = vadd.f32 0.0, %v619
        %621 = vdwg.mxu0
        %v623 = vsel %vm228, %v620, 0
        %625 = vmatpush.xpose.msra.mxu0 0.0
        %626 = vmatpush.xpose.msra.mxu0 0.0
        %627 = vmatpush.xpose.msra.mxu0 0.0
        %628 = vmatpush.xpose.msra.mxu0 0.0
        %629 = vmatpush.xpose.msra.mxu0 0.0
        %630 = vmatpush.xpose.msra.mxu0 0.0
        %631 = vmatpush.xpose.msra.mxu0 0.0
        %632 = vmatpush.xpose.msra.mxu0 0.0
        %633 = vmatpush.xpose.msra.mxu0 0.0
        %634 = vmatpush.xpose.msra.mxu0 0.0
        %635 = vmatpush.xpose.msra.mxu0 0.0
        %636 = vmatpush.xpose.msra.mxu0 0.0
        %637 = vmatpush.xpose.msra.mxu0 0.0
        %638 = vmatpush.xpose.msra.mxu0 0.0
        %639 = vmatpush.xpose.msra.mxu0 %v259
        %640 = vmatpush.xpose.msra.mxu0 %v256
        %641 = vmatmul.f32.gmra.mxu0 %v623
        %v642 = vpop.f32.mrf.mxu0
        %v643 = vadd.f32 0.0, %v642
        %644 = vdwg.mxu0
        %v645 = vsel %vm196, %v643, -inf
        %646 = vmax.xlane.f32.xlu0 %v645
        %v647 = vpop.xlane.xlu0 %646
        %v648 = vsub.f32 %v643, %v647
        %v649 = vmul.f32 %v648, 1.442695
        %v650 = vpow.pop %v649
        %v651 = vsel %vm196, %v650, 0.0
        %652 = vadd.xlane.f32.xlu0 %v651
        %v653 = vpop.xlane.xlu0 %652
        %v654 = vrcp.pop %v653
        %v655 = vmul.f32 %v653, %v654
        %v656 = vsub.f32 1.0, %v655
        %v657 = vmul.f32 %v654, %v656
        %v658 = vadd.f32 %v654, %v657
        %vm659 = vweird.f32 %v653
        %vm660 = vweird.f32 %v654
        %vm661 = vmor %vm659, %vm660
        %v662 = vsel %vm661, %v654, %v658
        %v663 = vand.u32 2147483647, %v653
        %vm664 = vcmp.eq.f32.partialorder %v663, 8.507059e+37
        %v665 = vand.u32 %v653, 2147483648
        %v666 = vor.u32 1.1754944e-38, %v665
        %v667 = vsel %vm664, %v666, %v662
        %v668 = vmul.f32 %v650, %v667
        %669 = vmatpush.msra.mxu0 0.0
        %670 = vmatpush.msra.mxu0 0.0
        %671 = vmatpush.msra.mxu0 0.0
        %672 = vmatpush.msra.mxu0 0.0
        %673 = vmatpush.msra.mxu0 0.0
        %674 = vmatpush.msra.mxu0 0.0
        %675 = vmatpush.msra.mxu0 0.0
        %676 = vmatpush.msra.mxu0 0.0
        %677 = vmatpush.msra.mxu0 0.0
        %678 = vmatpush.msra.mxu0 0.0
        %679 = vmatpush.msra.mxu0 0.0
        %680 = vmatpush.msra.mxu0 0.0
        %681 = vmatpush.msra.mxu0 %v601
        %682 = vmatpush.msra.mxu0 %v600
        %683 = vmatpush.msra.mxu0 %v599
        %684 = vmatpush.msra.mxu0 %v598
        %685 = vmatmul.f32.gmra.mxu0 %v256
        %v686 = vpop.f32.mrf.mxu0
        %v687 = vadd.f32 0.0, %v686
        %688 = vmatmul.f32.gmra.mxu0 %v259
        %v689 = vpop.f32.mrf.mxu0
        %v690 = vadd.f32 0.0, %v689
        %691 = vdwg.mxu0
        %v693 = vsel %vm196, %v668, 0
        %695 = vmatpush.msra.mxu0 0.0
        %696 = vmatpush.msra.mxu0 0.0
        %697 = vmatpush.msra.mxu0 0.0
        %698 = vmatpush.msra.mxu0 0.0
        %699 = vmatpush.msra.mxu0 0.0
        %700 = vmatpush.msra.mxu0 0.0
        %701 = vmatpush.msra.mxu0 0.0
        %702 = vmatpush.msra.mxu0 0.0
        %703 = vmatpush.msra.mxu0 0.0
        %704 = vmatpush.msra.mxu0 0.0
        %705 = vmatpush.msra.mxu0 0.0
        %706 = vmatpush.msra.mxu0 0.0
        %707 = vmatpush.msra.mxu0 0.0
        %708 = vmatpush.msra.mxu0 0.0
        %709 = vmatpush.msra.mxu0 %v690
        %710 = vmatpush.msra.mxu0 %v687
        %711 = vmatmul.f32.gmra.mxu0 %v693
        %v712 = vpop.f32.mrf.mxu0
        %v713 = vadd.f32 0.0, %v712
        %714 = vdwg.mxu0
        %v715 = vadd.f32 %v593, %v713
        %v716 = vadd.f32 %v715, %v218
        %717 = vmatpush.msra.mxu0 0.0
        %718 = vmatpush.msra.mxu0 0.0
        %719 = vmatpush.msra.mxu0 0.0
        %720 = vmatpush.msra.mxu0 0.0
        %721 = vmatpush.msra.mxu0 0.0
        %722 = vmatpush.msra.mxu0 0.0
        %723 = vmatpush.msra.mxu0 0.0
        %724 = vmatpush.msra.mxu0 0.0
        %725 = vmatpush.msra.mxu0 0.0
        %726 = vmatpush.msra.mxu0 0.0
        %727 = vmatpush.msra.mxu0 0.0
        %728 = vmatpush.msra.mxu0 0.0
        %729 = vmatpush.msra.mxu0 %v223
        %730 = vmatpush.msra.mxu0 %v222
        %731 = vmatpush.msra.mxu0 %v221
        %732 = vmatpush.msra.mxu0 %v220
        %733 = vmatmul.f32.gmra.mxu0 %v256
        %v734 = vpop.f32.mrf.mxu0
        %v735 = vadd.f32 0.0, %v734
        %736 = vmatmul.f32.gmra.mxu0 %v259
        %v737 = vpop.f32.mrf.mxu0
        %v738 = vadd.f32 0.0, %v737
        %739 = vdwg.mxu0
        %v741 = vsel %vm228, %v735, 0
        %v744 = vsel %vm228, %v738, 0
        %v747 = vsel %vm228, %v716, 0
        %749 = vmatpush.xpose.msra.mxu0 0.0
        %750 = vmatpush.xpose.msra.mxu0 0.0
        %751 = vmatpush.xpose.msra.mxu0 0.0
        %752 = vmatpush.xpose.msra.mxu0 0.0
        %753 = vmatpush.xpose.msra.mxu0 0.0
        %754 = vmatpush.xpose.msra.mxu0 0.0
        %755 = vmatpush.xpose.msra.mxu0 0.0
        %756 = vmatpush.xpose.msra.mxu0 0.0
        %757 = vmatpush.xpose.msra.mxu0 0.0
        %758 = vmatpush.xpose.msra.mxu0 0.0
        %759 = vmatpush.xpose.msra.mxu0 0.0
        %760 = vmatpush.xpose.msra.mxu0 0.0
        %761 = vmatpush.xpose.msra.mxu0 0.0
        %762 = vmatpush.xpose.msra.mxu0 0.0
        %763 = vmatpush.xpose.msra.mxu0 0.0
        %764 = vmatpush.xpose.msra.mxu0 %v747
        %765 = vmatmul.f32.gmra.mxu0 %v741
        %v766 = vpop.f32.mrf.mxu0
        %v767 = vadd.f32 0.0, %v766
        %768 = vmatmul.f32.gmra.mxu0 %v744
        %v769 = vpop.f32.mrf.mxu0
        %v770 = vadd.f32 0.0, %v769
        %771 = vdwg.mxu0
        %vm772 = vcmask 64512
        %v773 = vsel %vm772, %v767, -inf
        %774 = vmax.xlane.f32.xlu0 %v773
        %v775 = vpop.xlane.xlu0 %774
        %v776 = vsel %vm772, %v770, -inf
        %777 = vmax.xlane.f32.xlu0 %v776
        %v778 = vpop.xlane.xlu0 %777
        %v779 = vsub.f32 %v767, %v775
        %v780 = vsub.f32 %v770, %v778
        %v781 = vmul.f32 %v779, 1.442695
        %v782 = vpow.pop %v781
        %v783 = vmul.f32 %v780, 1.442695
        %v784 = vpow.pop %v783
        %v785 = vsel %vm772, %v782, 0.0
        %786 = vadd.xlane.f32.xlu0 %v785
        %v787 = vpop.xlane.xlu0 %786
        %v788 = vsel %vm772, %v784, 0.0
        %789 = vadd.xlane.f32.xlu0 %v788
        %v790 = vpop.xlane.xlu0 %789
        %v791 = vrcp.pop %v787
        %v792 = vmul.f32 %v787, %v791
        %v793 = vsub.f32 1.0, %v792
        %v794 = vmul.f32 %v791, %v793
        %v795 = vadd.f32 %v791, %v794
        %vm796 = vweird.f32 %v787
        %vm797 = vweird.f32 %v791
        %vm798 = vmor %vm796, %vm797
        %v799 = vsel %vm798, %v791, %v795
        %v800 = vand.u32 2147483647, %v787
        %vm801 = vcmp.eq.f32.partialorder %v800, 8.507059e+37
        %v802 = vand.u32 %v787, 2147483648
        %v803 = vor.u32 1.1754944e-38, %v802
        %v804 = vsel %vm801, %v803, %v799
        %v805 = vmul.f32 %v782, %v804
        %v806 = vrcp.pop %v790
        %v807 = vmul.f32 %v790, %v806
        %v808 = vsub.f32 1.0, %v807
        %v809 = vmul.f32 %v806, %v808
        %v810 = vadd.f32 %v806, %v809
        %vm811 = vweird.f32 %v790
        %vm812 = vweird.f32 %v806
        %vm813 = vmor %vm811, %vm812
        %v814 = vsel %vm813, %v806, %v810
        %v815 = vand.u32 2147483647, %v790
        %vm816 = vcmp.eq.f32.partialorder %v815, 8.507059e+37
        %v817 = vand.u32 %v790, 2147483648
        %v818 = vor.u32 1.1754944e-38, %v817
        %v819 = vsel %vm816, %v818, %v814
        %v820 = vmul.f32 %v784, %v819
        %821 = vmatpush.msra.mxu0 0.0
        %822 = vmatpush.msra.mxu0 0.0
        %823 = vmatpush.msra.mxu0 0.0
        %824 = vmatpush.msra.mxu0 0.0
        %825 = vmatpush.msra.mxu0 0.0
        %826 = vmatpush.msra.mxu0 0.0
        %827 = vmatpush.msra.mxu0 0.0
        %828 = vmatpush.msra.mxu0 0.0
        %829 = vmatpush.msra.mxu0 0.0
        %830 = vmatpush.msra.mxu0 0.0
        %831 = vmatpush.msra.mxu0 0.0
        %832 = vmatpush.msra.mxu0 0.0
        %833 = vmatpush.msra.mxu0 %v227
        %834 = vmatpush.msra.mxu0 %v226
        %835 = vmatpush.msra.mxu0 %v225
        %836 = vmatpush.msra.mxu0 %v224
        %837 = vmatmul.f32.gmra.mxu0 %v747
        %v838 = vpop.f32.mrf.mxu0
        %v839 = vadd.f32 0.0, %v838
        %840 = vdwg.mxu0
        %841 = vmatpush.msra.mxu0 0.0
        %842 = vmatpush.msra.mxu0 0.0
        %843 = vmatpush.msra.mxu0 0.0
        %844 = vmatpush.msra.mxu0 0.0
        %845 = vmatpush.msra.mxu0 0.0
        %846 = vmatpush.msra.mxu0 0.0
        %847 = vmatpush.msra.mxu0 0.0
        %848 = vmatpush.msra.mxu0 0.0
        %849 = vmatpush.msra.mxu0 0.0
        %850 = vmatpush.msra.mxu0 0.0
        %851 = vmatpush.msra.mxu0 0.0
        %852 = vmatpush.msra.mxu0 0.0
        %853 = vmatpush.msra.mxu0 %v331
        %854 = vmatpush.msra.mxu0 %v330
        %855 = vmatpush.msra.mxu0 %v329
        %856 = vmatpush.msra.mxu0 %v328
        %857 = vmatmul.f32.gmra.mxu0 %v256
        %v858 = vpop.f32.mrf.mxu0
        %v859 = vadd.f32 0.0, %v858
        %860 = vmatmul.f32.gmra.mxu0 %v259
        %v861 = vpop.f32.mrf.mxu0
        %v862 = vadd.f32 0.0, %v861
        %863 = vdwg.mxu0
        %v865 = vsel %vm228, %v859, 0
        %v868 = vsel %vm228, %v862, 0
        %870 = vmatpush.xpose.msra.mxu0 0.0
        %871 = vmatpush.xpose.msra.mxu0 0.0
        %872 = vmatpush.xpose.msra.mxu0 0.0
        %873 = vmatpush.xpose.msra.mxu0 0.0
        %874 = vmatpush.xpose.msra.mxu0 0.0
        %875 = vmatpush.xpose.msra.mxu0 0.0
        %876 = vmatpush.xpose.msra.mxu0 0.0
        %877 = vmatpush.xpose.msra.mxu0 0.0
        %878 = vmatpush.xpose.msra.mxu0 0.0
        %879 = vmatpush.xpose.msra.mxu0 0.0
        %880 = vmatpush.xpose.msra.mxu0 0.0
        %881 = vmatpush.xpose.msra.mxu0 0.0
        %882 = vmatpush.xpose.msra.mxu0 0.0
        %883 = vmatpush.xpose.msra.mxu0 0.0
        %884 = vmatpush.xpose.msra.mxu0 0.0
        %885 = vmatpush.xpose.msra.mxu0 %v747
        %886 = vmatmul.f32.gmra.mxu0 %v865
        %v887 = vpop.f32.mrf.mxu0
        %v888 = vadd.f32 0.0, %v887
        %889 = vmatmul.f32.gmra.mxu0 %v868
        %v890 = vpop.f32.mrf.mxu0
        %v891 = vadd.f32 0.0, %v890
        %892 = vdwg.mxu0
        %v893 = vsel %vm772, %v888, -inf
        %894 = vmax.xlane.f32.xlu0 %v893
        %v895 = vpop.xlane.xlu0 %894
        %v896 = vsel %vm772, %v891, -inf
        %897 = vmax.xlane.f32.xlu0 %v896
        %v898 = vpop.xlane.xlu0 %897
        %v899 = vsub.f32 %v888, %v895
        %v900 = vsub.f32 %v891, %v898
        %v901 = vmul.f32 %v899, 1.442695
        %v902 = vpow.pop %v901
        %v903 = vmul.f32 %v900, 1.442695
        %v904 = vpow.pop %v903
        %v905 = vsel %vm772, %v902, 0.0
        %906 = vadd.xlane.f32.xlu0 %v905
        %v907 = vpop.xlane.xlu0 %906
        %v908 = vsel %vm772, %v904, 0.0
        %909 = vadd.xlane.f32.xlu0 %v908
        %v910 = vpop.xlane.xlu0 %909
        %v911 = vrcp.pop %v907
        %v912 = vmul.f32 %v907, %v911
        %v913 = vsub.f32 1.0, %v912
        %v914 = vmul.f32 %v911, %v913
        %v915 = vadd.f32 %v911, %v914
        %vm916 = vweird.f32 %v907
        %vm917 = vweird.f32 %v911
        %vm918 = vmor %vm916, %vm917
        %v919 = vsel %vm918, %v911, %v915
        %v920 = vand.u32 2147483647, %v907
        %vm921 = vcmp.eq.f32.partialorder %v920, 8.507059e+37
        %v922 = vand.u32 %v907, 2147483648
        %v923 = vor.u32 1.1754944e-38, %v922
        %v924 = vsel %vm921, %v923, %v919
        %v925 = vmul.f32 %v902, %v924
        %v926 = vrcp.pop %v910
        %v927 = vmul.f32 %v910, %v926
        %v928 = vsub.f32 1.0, %v927
        %v929 = vmul.f32 %v926, %v928
        %v930 = vadd.f32 %v926, %v929
        %vm931 = vweird.f32 %v910
        %vm932 = vweird.f32 %v926
        %vm933 = vmor %vm931, %vm932
        %v934 = vsel %vm933, %v926, %v930
        %v935 = vand.u32 2147483647, %v910
        %vm936 = vcmp.eq.f32.partialorder %v935, 8.507059e+37
        %v937 = vand.u32 %v910, 2147483648
        %v938 = vor.u32 1.1754944e-38, %v937
        %v939 = vsel %vm936, %v938, %v934
        %v940 = vmul.f32 %v904, %v939
        %941 = vmatpush.msra.mxu0 0.0
        %942 = vmatpush.msra.mxu0 0.0
        %943 = vmatpush.msra.mxu0 0.0
        %944 = vmatpush.msra.mxu0 0.0
        %945 = vmatpush.msra.mxu0 0.0
        %946 = vmatpush.msra.mxu0 0.0
        %947 = vmatpush.msra.mxu0 0.0
        %948 = vmatpush.msra.mxu0 0.0
        %949 = vmatpush.msra.mxu0 0.0
        %950 = vmatpush.msra.mxu0 0.0
        %951 = vmatpush.msra.mxu0 0.0
        %952 = vmatpush.msra.mxu0 0.0
        %953 = vmatpush.msra.mxu0 %v335
        %954 = vmatpush.msra.mxu0 %v334
        %955 = vmatpush.msra.mxu0 %v333
        %956 = vmatpush.msra.mxu0 %v332
        %957 = vmatmul.f32.gmra.mxu0 %v747
        %v958 = vpop.f32.mrf.mxu0
        %v959 = vadd.f32 0.0, %v958
        %960 = vdwg.mxu0
        %v962 = vsel %vm772, %v925, 0
        %v965 = vsel %vm772, %v940, 0
        %967 = vmatpush.msra.mxu0 0.0
        %968 = vmatpush.msra.mxu0 0.0
        %969 = vmatpush.msra.mxu0 0.0
        %970 = vmatpush.msra.mxu0 0.0
        %971 = vmatpush.msra.mxu0 0.0
        %972 = vmatpush.msra.mxu0 0.0
        %973 = vmatpush.msra.mxu0 0.0
        %974 = vmatpush.msra.mxu0 0.0
        %975 = vmatpush.msra.mxu0 0.0
        %976 = vmatpush.msra.mxu0 0.0
        %977 = vmatpush.msra.mxu0 0.0
        %978 = vmatpush.msra.mxu0 0.0
        %979 = vmatpush.msra.mxu0 0.0
        %980 = vmatpush.msra.mxu0 0.0
        %981 = vmatpush.msra.mxu0 0.0
        %982 = vmatpush.msra.mxu0 %v959
        %983 = vmatmul.f32.gmra.mxu0 %v962
        %v984 = vpop.f32.mrf.mxu0
        %v985 = vadd.f32 0.0, %v984
        %986 = vmatmul.f32.gmra.mxu0 %v965
        %v987 = vpop.f32.mrf.mxu0
        %v988 = vadd.f32 0.0, %v987
        %989 = vdwg.mxu0
        %v991 = vsel %vm772, %v805, 0
        %v994 = vsel %vm772, %v820, 0
        %996 = vmatpush.msra.mxu0 0.0
        %997 = vmatpush.msra.mxu0 0.0
        %998 = vmatpush.msra.mxu0 0.0
        %999 = vmatpush.msra.mxu0 0.0
        %1000 = vmatpush.msra.mxu0 0.0
        %1001 = vmatpush.msra.mxu0 0.0
        %1002 = vmatpush.msra.mxu0 0.0
        %1003 = vmatpush.msra.mxu0 0.0
        %1004 = vmatpush.msra.mxu0 0.0
        %1005 = vmatpush.msra.mxu0 0.0
        %1006 = vmatpush.msra.mxu0 0.0
        %1007 = vmatpush.msra.mxu0 0.0
        %1008 = vmatpush.msra.mxu0 0.0
        %1009 = vmatpush.msra.mxu0 0.0
        %1010 = vmatpush.msra.mxu0 0.0
        %1011 = vmatpush.msra.mxu0 %v839
        %1012 = vmatmul.f32.gmra.mxu0 %v991
        %v1013 = vpop.f32.mrf.mxu0
        %v1014 = vadd.f32 %v985, %v1013
        %1015 = vmatmul.f32.gmra.mxu0 %v994
        %v1016 = vpop.f32.mrf.mxu0
        %v1017 = vadd.f32 %v988, %v1016
        %1018 = vdwg.mxu0
        %1019 = vmatpush.msra.mxu0 0.0
        %1020 = vmatpush.msra.mxu0 0.0
        %1021 = vmatpush.msra.mxu0 0.0
        %1022 = vmatpush.msra.mxu0 0.0
        %1023 = vmatpush.msra.mxu0 0.0
        %1024 = vmatpush.msra.mxu0 0.0
        %1025 = vmatpush.msra.mxu0 0.0
        %1026 = vmatpush.msra.mxu0 0.0
        %1027 = vmatpush.msra.mxu0 0.0
        %1028 = vmatpush.msra.mxu0 0.0
        %1029 = vmatpush.msra.mxu0 0.0
        %1030 = vmatpush.msra.mxu0 0.0
        %1031 = vmatpush.msra.mxu0 %v475
        %1032 = vmatpush.msra.mxu0 %v474
        %1033 = vmatpush.msra.mxu0 %v473
        %1034 = vmatpush.msra.mxu0 %v472
        %1035 = vmatmul.f32.gmra.mxu0 %v256
        %v1036 = vpop.f32.mrf.mxu0
        %v1037 = vadd.f32 0.0, %v1036
        %1038 = vmatmul.f32.gmra.mxu0 %v259
        %v1039 = vpop.f32.mrf.mxu0
        %v1040 = vadd.f32 0.0, %v1039
        %1041 = vdwg.mxu0
        %v1043 = vsel %vm228, %v1037, 0
        %v1046 = vsel %vm228, %v1040, 0
        %1048 = vmatpush.xpose.msra.mxu0 0.0
        %1049 = vmatpush.xpose.msra.mxu0 0.0
        %1050 = vmatpush.xpose.msra.mxu0 0.0
        %1051 = vmatpush.xpose.msra.mxu0 0.0
        %1052 = vmatpush.xpose.msra.mxu0 0.0
        %1053 = vmatpush.xpose.msra.mxu0 0.0
        %1054 = vmatpush.xpose.msra.mxu0 0.0
        %1055 = vmatpush.xpose.msra.mxu0 0.0
        %1056 = vmatpush.xpose.msra.mxu0 0.0
        %1057 = vmatpush.xpose.msra.mxu0 0.0
        %1058 = vmatpush.xpose.msra.mxu0 0.0
        %1059 = vmatpush.xpose.msra.mxu0 0.0
        %1060 = vmatpush.xpose.msra.mxu0 0.0
        %1061 = vmatpush.xpose.msra.mxu0 0.0
        %1062 = vmatpush.xpose.msra.mxu0 0.0
        %1063 = vmatpush.xpose.msra.mxu0 %v747
        %1064 = vmatmul.f32.gmra.mxu0 %v1043
        %v1065 = vpop.f32.mrf.mxu0
        %v1066 = vadd.f32 0.0, %v1065
        %1067 = vmatmul.f32.gmra.mxu0 %v1046
        %v1068 = vpop.f32.mrf.mxu0
        %v1069 = vadd.f32 0.0, %v1068
        %1070 = vdwg.mxu0
        %v1071 = vsel %vm772, %v1066, -inf
        %1072 = vmax.xlane.f32.xlu0 %v1071
        %v1073 = vpop.xlane.xlu0 %1072
        %v1074 = vsel %vm772, %v1069, -inf
        %1075 = vmax.xlane.f32.xlu0 %v1074
        %v1076 = vpop.xlane.xlu0 %1075
        %v1077 = vsub.f32 %v1066, %v1073
        %v1078 = vsub.f32 %v1069, %v1076
        %v1079 = vmul.f32 %v1077, 1.442695
        %v1080 = vpow.pop %v1079
        %v1081 = vmul.f32 %v1078, 1.442695
        %v1082 = vpow.pop %v1081
        %v1083 = vsel %vm772, %v1080, 0.0
        %1084 = vadd.xlane.f32.xlu0 %v1083
        %v1085 = vpop.xlane.xlu0 %1084
        %v1086 = vsel %vm772, %v1082, 0.0
        %1087 = vadd.xlane.f32.xlu0 %v1086
        %v1088 = vpop.xlane.xlu0 %1087
        %v1089 = vrcp.pop %v1085
        %v1090 = vmul.f32 %v1085, %v1089
        %v1091 = vsub.f32 1.0, %v1090
        %v1092 = vmul.f32 %v1089, %v1091
        %v1093 = vadd.f32 %v1089, %v1092
        %vm1094 = vweird.f32 %v1085
        %vm1095 = vweird.f32 %v1089
        %vm1096 = vmor %vm1094, %vm1095
        %v1097 = vsel %vm1096, %v1089, %v1093
        %v1098 = vand.u32 2147483647, %v1085
        %vm1099 = vcmp.eq.f32.partialorder %v1098, 8.507059e+37
        %v1100 = vand.u32 %v1085, 2147483648
        %v1101 = vor.u32 1.1754944e-38, %v1100
        %v1102 = vsel %vm1099, %v1101, %v1097
        %v1103 = vmul.f32 %v1080, %v1102
        %v1104 = vrcp.pop %v1088
        %v1105 = vmul.f32 %v1088, %v1104
        %v1106 = vsub.f32 1.0, %v1105
        %v1107 = vmul.f32 %v1104, %v1106
        %v1108 = vadd.f32 %v1104, %v1107
        %vm1109 = vweird.f32 %v1088
        %vm1110 = vweird.f32 %v1104
        %vm1111 = vmor %vm1109, %vm1110
        %v1112 = vsel %vm1111, %v1104, %v1108
        %v1113 = vand.u32 2147483647, %v1088
        %vm1114 = vcmp.eq.f32.partialorder %v1113, 8.507059e+37
        %v1115 = vand.u32 %v1088, 2147483648
        %v1116 = vor.u32 1.1754944e-38, %v1115
        %v1117 = vsel %vm1114, %v1116, %v1112
        %v1118 = vmul.f32 %v1082, %v1117
        %1119 = vmatpush.msra.mxu0 0.0
        %1120 = vmatpush.msra.mxu0 0.0
        %1121 = vmatpush.msra.mxu0 0.0
        %1122 = vmatpush.msra.mxu0 0.0
        %1123 = vmatpush.msra.mxu0 0.0
        %1124 = vmatpush.msra.mxu0 0.0
        %1125 = vmatpush.msra.mxu0 0.0
        %1126 = vmatpush.msra.mxu0 0.0
        %1127 = vmatpush.msra.mxu0 0.0
        %1128 = vmatpush.msra.mxu0 0.0
        %1129 = vmatpush.msra.mxu0 0.0
        %1130 = vmatpush.msra.mxu0 0.0
        %1131 = vmatpush.msra.mxu0 %v479
        %1132 = vmatpush.msra.mxu0 %v478
        %1133 = vmatpush.msra.mxu0 %v477
        %1134 = vmatpush.msra.mxu0 %v476
        %1135 = vmatmul.f32.gmra.mxu0 %v747
        %v1136 = vpop.f32.mrf.mxu0
        %v1137 = vadd.f32 0.0, %v1136
        %1138 = vdwg.mxu0
        %v1140 = vsel %vm772, %v1103, 0
        %v1143 = vsel %vm772, %v1118, 0
        %1145 = vmatpush.msra.mxu0 0.0
        %1146 = vmatpush.msra.mxu0 0.0
        %1147 = vmatpush.msra.mxu0 0.0
        %1148 = vmatpush.msra.mxu0 0.0
        %1149 = vmatpush.msra.mxu0 0.0
        %1150 = vmatpush.msra.mxu0 0.0
        %1151 = vmatpush.msra.mxu0 0.0
        %1152 = vmatpush.msra.mxu0 0.0
        %1153 = vmatpush.msra.mxu0 0.0
        %1154 = vmatpush.msra.mxu0 0.0
        %1155 = vmatpush.msra.mxu0 0.0
        %1156 = vmatpush.msra.mxu0 0.0
        %1157 = vmatpush.msra.mxu0 0.0
        %1158 = vmatpush.msra.mxu0 0.0
        %1159 = vmatpush.msra.mxu0 0.0
        %1160 = vmatpush.msra.mxu0 %v1137
        %1161 = vmatmul.f32.gmra.mxu0 %v1140
        %v1162 = vpop.f32.mrf.mxu0
        %v1163 = vadd.f32 0.0, %v1162
        %1164 = vmatmul.f32.gmra.mxu0 %v1143
        %v1165 = vpop.f32.mrf.mxu0
        %v1166 = vadd.f32 0.0, %v1165
        %1167 = vdwg.mxu0
        %v1168 = vadd.f32 %v1014, %v1163
        %v1169 = vadd.f32 %v1017, %v1166
        %1170 = vmatpush.msra.mxu0 0.0
        %1171 = vmatpush.msra.mxu0 0.0
        %1172 = vmatpush.msra.mxu0 0.0
        %1173 = vmatpush.msra.mxu0 0.0
        %1174 = vmatpush.msra.mxu0 0.0
        %1175 = vmatpush.msra.mxu0 0.0
        %1176 = vmatpush.msra.mxu0 0.0
        %1177 = vmatpush.msra.mxu0 0.0
        %1178 = vmatpush.msra.mxu0 0.0
        %1179 = vmatpush.msra.mxu0 0.0
        %1180 = vmatpush.msra.mxu0 0.0
        %1181 = vmatpush.msra.mxu0 0.0
        %1182 = vmatpush.msra.mxu0 %v597
        %1183 = vmatpush.msra.mxu0 %v596
        %1184 = vmatpush.msra.mxu0 %v595
        %1185 = vmatpush.msra.mxu0 %v594
        %1186 = vmatmul.f32.gmra.mxu0 %v256
        %v1187 = vpop.f32.mrf.mxu0
        %v1188 = vadd.f32 0.0, %v1187
        %1189 = vmatmul.f32.gmra.mxu0 %v259
        %v1190 = vpop.f32.mrf.mxu0
        %v1191 = vadd.f32 0.0, %v1190
        %1192 = vdwg.mxu0
        %v1194 = vsel %vm228, %v1188, 0
        %v1197 = vsel %vm228, %v1191, 0
        %1199 = vmatpush.xpose.msra.mxu0 0.0
        %1200 = vmatpush.xpose.msra.mxu0 0.0
        %1201 = vmatpush.xpose.msra.mxu0 0.0
        %1202 = vmatpush.xpose.msra.mxu0 0.0
        %1203 = vmatpush.xpose.msra.mxu0 0.0
        %1204 = vmatpush.xpose.msra.mxu0 0.0
        %1205 = vmatpush.xpose.msra.mxu0 0.0
        %1206 = vmatpush.xpose.msra.mxu0 0.0
        %1207 = vmatpush.xpose.msra.mxu0 0.0
        %1208 = vmatpush.xpose.msra.mxu0 0.0
        %1209 = vmatpush.xpose.msra.mxu0 0.0
        %1210 = vmatpush.xpose.msra.mxu0 0.0
        %1211 = vmatpush.xpose.msra.mxu0 0.0
        %1212 = vmatpush.xpose.msra.mxu0 0.0
        %1213 = vmatpush.xpose.msra.mxu0 0.0
        %1214 = vmatpush.xpose.msra.mxu0 %v747
        %1215 = vmatmul.f32.gmra.mxu0 %v1194
        %v1216 = vpop.f32.mrf.mxu0
        %v1217 = vadd.f32 0.0, %v1216
        %1218 = vmatmul.f32.gmra.mxu0 %v1197
        %v1219 = vpop.f32.mrf.mxu0
        %v1220 = vadd.f32 0.0, %v1219
        %1221 = vdwg.mxu0
        %v1222 = vsel %vm772, %v1217, -inf
        %1223 = vmax.xlane.f32.xlu0 %v1222
        %v1224 = vpop.xlane.xlu0 %1223
        %v1225 = vsel %vm772, %v1220, -inf
        %1226 = vmax.xlane.f32.xlu0 %v1225
        %v1227 = vpop.xlane.xlu0 %1226
        %v1228 = vsub.f32 %v1217, %v1224
        %v1229 = vsub.f32 %v1220, %v1227
        %v1230 = vmul.f32 %v1228, 1.442695
        %v1231 = vpow.pop %v1230
        %v1232 = vmul.f32 %v1229, 1.442695
        %v1233 = vpow.pop %v1232
        %v1234 = vsel %vm772, %v1231, 0.0
        %1235 = vadd.xlane.f32.xlu0 %v1234
        %v1236 = vpop.xlane.xlu0 %1235
        %v1237 = vsel %vm772, %v1233, 0.0
        %1238 = vadd.xlane.f32.xlu0 %v1237
        %v1239 = vpop.xlane.xlu0 %1238
        %v1240 = vrcp.pop %v1236
        %v1241 = vmul.f32 %v1236, %v1240
        %v1242 = vsub.f32 1.0, %v1241
        %v1243 = vmul.f32 %v1240, %v1242
        %v1244 = vadd.f32 %v1240, %v1243
        %vm1245 = vweird.f32 %v1236
        %vm1246 = vweird.f32 %v1240
        %vm1247 = vmor %vm1245, %vm1246
        %v1248 = vsel %vm1247, %v1240, %v1244
        %v1249 = vand.u32 2147483647, %v1236
        %vm1250 = vcmp.eq.f32.partialorder %v1249, 8.507059e+37
        %v1251 = vand.u32 %v1236, 2147483648
        %v1252 = vor.u32 1.1754944e-38, %v1251
        %v1253 = vsel %vm1250, %v1252, %v1248
        %v1254 = vmul.f32 %v1231, %v1253
        %v1255 = vrcp.pop %v1239
        %v1256 = vmul.f32 %v1239, %v1255
        %v1257 = vsub.f32 1.0, %v1256
        %v1258 = vmul.f32 %v1255, %v1257
        %v1259 = vadd.f32 %v1255, %v1258
        %vm1260 = vweird.f32 %v1239
        %vm1261 = vweird.f32 %v1255
        %vm1262 = vmor %vm1260, %vm1261
        %v1263 = vsel %vm1262, %v1255, %v1259
        %v1264 = vand.u32 2147483647, %v1239
        %vm1265 = vcmp.eq.f32.partialorder %v1264, 8.507059e+37
        %v1266 = vand.u32 %v1239, 2147483648
        %v1267 = vor.u32 1.1754944e-38, %v1266
        %v1268 = vsel %vm1265, %v1267, %v1263
        %v1269 = vmul.f32 %v1233, %v1268
        %1270 = vmatpush.msra.mxu0 0.0
        %1271 = vmatpush.msra.mxu0 0.0
        %1272 = vmatpush.msra.mxu0 0.0
        %1273 = vmatpush.msra.mxu0 0.0
        %1274 = vmatpush.msra.mxu0 0.0
        %1275 = vmatpush.msra.mxu0 0.0
        %1276 = vmatpush.msra.mxu0 0.0
        %1277 = vmatpush.msra.mxu0 0.0
        %1278 = vmatpush.msra.mxu0 0.0
        %1279 = vmatpush.msra.mxu0 0.0
        %1280 = vmatpush.msra.mxu0 0.0
        %1281 = vmatpush.msra.mxu0 0.0
        %1282 = vmatpush.msra.mxu0 %v601
        %1283 = vmatpush.msra.mxu0 %v600
        %1284 = vmatpush.msra.mxu0 %v599
        %1285 = vmatpush.msra.mxu0 %v598
        %1286 = vmatmul.f32.gmra.mxu0 %v747
        %v1287 = vpop.f32.mrf.mxu0
        %v1288 = vadd.f32 0.0, %v1287
        %1289 = vdwg.mxu0
        %v1291 = vsel %vm772, %v1254, 0
        %v1294 = vsel %vm772, %v1269, 0
        %1296 = vmatpush.msra.mxu0 0.0
        %1297 = vmatpush.msra.mxu0 0.0
        %1298 = vmatpush.msra.mxu0 0.0
        %1299 = vmatpush.msra.mxu0 0.0
        %1300 = vmatpush.msra.mxu0 0.0
        %1301 = vmatpush.msra.mxu0 0.0
        %1302 = vmatpush.msra.mxu0 0.0
        %1303 = vmatpush.msra.mxu0 0.0
        %1304 = vmatpush.msra.mxu0 0.0
        %1305 = vmatpush.msra.mxu0 0.0
        %1306 = vmatpush.msra.mxu0 0.0
        %1307 = vmatpush.msra.mxu0 0.0
        %1308 = vmatpush.msra.mxu0 0.0
        %1309 = vmatpush.msra.mxu0 0.0
        %1310 = vmatpush.msra.mxu0 0.0
        %1311 = vmatpush.msra.mxu0 %v1288
        %1312 = vmatmul.f32.gmra.mxu0 %v1291
        %v1313 = vpop.f32.mrf.mxu0
        %v1314 = vadd.f32 0.0, %v1313
        %1315 = vmatmul.f32.gmra.mxu0 %v1294
        %v1316 = vpop.f32.mrf.mxu0
        %v1317 = vadd.f32 0.0, %v1316
        %1318 = vdwg.mxu0
        %v1319 = vadd.f32 %v1168, %v1314
        %v1320 = vadd.f32 %v1169, %v1317
        %v1321 = vld [vmem:[%s2 + $0x140] sm:$0x1]
        %v1322 = vld [vmem:[%s2 + $0x141] sm:$0x1]
        %v1323 = vld [vmem:[%s2 + $0x142] sm:$0x1]
        %v1324 = vld [vmem:[%s2 + $0x143] sm:$0x1]
        %v1325 = vld [vmem:[%s2 + $0x144] sm:$0x1]
        %v1326 = vld [vmem:[%s2 + $0x145] sm:$0x1]
        %v1327 = vadd.f32 %v1319, %v186
        %v1328 = vadd.f32 %v1320, %v187
        %v1329 = vsel %vm228, %v1327, 0.0
        %1330 = vadd.xlane.f32.xlu0 %v1329
        %v1331 = vpop.xlane.xlu0 %1330
        %v1332 = vsel %vm228, %v1328, 0.0
        %1333 = vadd.xlane.f32.xlu0 %v1332
        %v1334 = vpop.xlane.xlu0 %1333
        %v1335 = vrcp.pop 32.0
        %v1336 = vmul.f32 32.0, %v1335
        %v1337 = vsub.f32 1.0, %v1336
        %v1338 = vmul.f32 %v1335, %v1337
        %v1339 = vadd.f32 %v1335, %v1338
        %vm1340 = vweird.f32 %v1335
        %v1341 = vsel %vm1340, %v1335, %v1339
        %v1342 = vmul.f32 %v1331, %v1341
        %v1343 = vmul.f32 %v1334, %v1341
        %v1344 = vsub.f32 %v1327, %v1342
        %v1345 = vsub.f32 %v1328, %v1343
        %v1346 = vmul.f32 %v1344, %v1344
        %v1347 = vmul.f32 %v1345, %v1345
        %v1348 = vsel %vm228, %v1346, 0.0
        %1349 = vadd.xlane.f32.xlu0 %v1348
        %v1350 = vpop.xlane.xlu0 %1349
        %v1351 = vsel %vm228, %v1347, 0.0
        %1352 = vadd.xlane.f32.xlu0 %v1351
        %v1353 = vpop.xlane.xlu0 %1352
        %v1354 = vmul.f32 %v1350, %v1341
        %v1355 = vmul.f32 %v1353, %v1341
        %v1356 = vadd.f32 %v1354, 1e-05
        %v1357 = vadd.f32 %v1355, 1e-05
        %v1358 = vrsqrt.pop %v1356
        %v1359 = vmul.f32 %v1358, %v1356
        %v1360 = vmul.f32 %v1359, %v1358
        %v1361 = vmul.f32 0.5, %v1360
        %v1362 = vsub.f32 1.5, %v1361
        %v1363 = vmul.f32 %v1358, %v1362
        %vm1364 = vweird.f32 %v1356
        %vm1365 = vweird.f32 %v1358
        %vm1366 = vmor %vm1364, %vm1365
        %v1367 = vsel %vm1366, %v1358, %v1363
        %v1368 = vrsqrt.pop %v1357
        %v1369 = vmul.f32 %v1368, %v1357
        %v1370 = vmul.f32 %v1369, %v1368
        %v1371 = vmul.f32 0.5, %v1370
        %v1372 = vsub.f32 1.5, %v1371
        %v1373 = vmul.f32 %v1368, %v1372
        %vm1374 = vweird.f32 %v1357
        %vm1375 = vweird.f32 %v1368
        %vm1376 = vmor %vm1374, %vm1375
        %v1377 = vsel %vm1376, %v1368, %v1373
        %v1378 = vmul.f32 %v1344, %v1367
        %v1379 = vmul.f32 %v1345, %v1377
        %v1380 = vperm.slane %v1323, 0
        %v1381 = vmul.f32 %v1378, %v1380
        %v1382 = vmul.f32 %v1379, %v1380
        %v1383 = vperm.slane %v1324, 0
        %v1384 = vadd.f32 %v1381, %v1383
        %v1385 = vadd.f32 %v1382, %v1383
        %v1386 = vld [vmem:[%s2 + $0x100] sm:$0xff]
        %v1387 = vld [vmem:[%s2 + $0x108] sm:$0xff]
        %v1388 = vld [vmem:[%s2 + $0x110] sm:$0xff]
        %v1389 = vld [vmem:[%s2 + $0x118] sm:$0xff]
        %v1390 = vperm.slane %v1321, 0
        %v1392 = vsel %vm228, %v1384, 0
        %v1395 = vsel %vm228, %v1385, 0
        %1397 = vmatpush.msra.mxu0 0.0
        %1398 = vmatpush.msra.mxu0 0.0
        %1399 = vmatpush.msra.mxu0 0.0
        %1400 = vmatpush.msra.mxu0 0.0
        %1401 = vmatpush.msra.mxu0 0.0
        %1402 = vmatpush.msra.mxu0 0.0
        %1403 = vmatpush.msra.mxu0 0.0
        %1404 = vmatpush.msra.mxu0 0.0
        %1405 = vmatpush.msra.mxu0 0.0
        %1406 = vmatpush.msra.mxu0 0.0
        %1407 = vmatpush.msra.mxu0 0.0
        %1408 = vmatpush.msra.mxu0 0.0
        %1409 = vmatpush.msra.mxu0 %v1389
        %1410 = vmatpush.msra.mxu0 %v1388
        %1411 = vmatpush.msra.mxu0 %v1387
        %1412 = vmatpush.msra.mxu0 %v1386
        %1413 = vmatmul.f32.gmra.mxu0 %v1392
        %v1414 = vpop.f32.mrf.mxu0
        %v1415 = vadd.f32 %v1390, %v1414
        %1416 = vmatmul.f32.gmra.mxu0 %v1395
        %v1417 = vpop.f32.mrf.mxu0
        %v1418 = vadd.f32 %v1390, %v1417
        %1419 = vdwg.mxu0
        %v1420 = vmax.f32 %v1415, 0.0
        %v1421 = vmax.f32 %v1418, 0.0
        %v1422 = vld [vmem:[%s2 + $0x120] sm:$0xff]
        %v1423 = vld [vmem:[%s2 + $0x128] sm:$0xff]
        %v1424 = vld [vmem:[%s2 + $0x130] sm:$0xff]
        %v1425 = vld [vmem:[%s2 + $0x138] sm:$0xff]
        %v1426 = vperm.slane %v1322, 0
        %v1428 = vsel %vm228, %v1420, 0
        %v1431 = vsel %vm228, %v1421, 0
        %1433 = vmatpush.msra.mxu0 0.0
        %1434 = vmatpush.msra.mxu0 0.0
        %1435 = vmatpush.msra.mxu0 0.0
        %1436 = vmatpush.msra.mxu0 0.0
        %1437 = vmatpush.msra.mxu0 0.0
        %1438 = vmatpush.msra.mxu0 0.0
        %1439 = vmatpush.msra.mxu0 0.0
        %1440 = vmatpush.msra.mxu0 0.0
        %1441 = vmatpush.msra.mxu0 0.0
        %1442 = vmatpush.msra.mxu0 0.0
        %1443 = vmatpush.msra.mxu0 0.0
        %1444 = vmatpush.msra.mxu0 0.0
        %1445 = vmatpush.msra.mxu0 %v1425
        %1446 = vmatpush.msra.mxu0 %v1424
        %1447 = vmatpush.msra.mxu0 %v1423
        %1448 = vmatpush.msra.mxu0 %v1422
        %1449 = vmatmul.f32.gmra.mxu0 %v1428
        %v1450 = vpop.f32.mrf.mxu0
        %v1451 = vadd.f32 %v1426, %v1450
        %1452 = vmatmul.f32.gmra.mxu0 %v1431
        %v1453 = vpop.f32.mrf.mxu0
        %v1454 = vadd.f32 %v1426, %v1453
        %1455 = vdwg.mxu0
        %v1456 = vmax.f32 %v1451, 0.0
        %v1457 = vmax.f32 %v1454, 0.0
        %v1458 = vadd.f32 %v1456, %v1384
        %v1459 = vadd.f32 %v1457, %v1385
        %v1460 = vsel %vm228, %v1458, 0.0
        %1461 = vadd.xlane.f32.xlu0 %v1460
        %v1462 = vpop.xlane.xlu0 %1461
        %v1463 = vsel %vm228, %v1459, 0.0
        %1464 = vadd.xlane.f32.xlu0 %v1463
        %v1465 = vpop.xlane.xlu0 %1464
        %v1466 = vmul.f32 %v1462, %v1341
        %v1467 = vmul.f32 %v1465, %v1341
        %v1468 = vsub.f32 %v1458, %v1466
        %v1469 = vsub.f32 %v1459, %v1467
        %v1470 = vmul.f32 %v1468, %v1468
        %v1471 = vmul.f32 %v1469, %v1469
        %v1472 = vsel %vm228, %v1470, 0.0
        %1473 = vadd.xlane.f32.xlu0 %v1472
        %v1474 = vpop.xlane.xlu0 %1473
        %v1475 = vsel %vm228, %v1471, 0.0
        %1476 = vadd.xlane.f32.xlu0 %v1475
        %v1477 = vpop.xlane.xlu0 %1476
        %v1478 = vmul.f32 %v1474, %v1341
        %v1479 = vmul.f32 %v1477, %v1341
        %v1480 = vadd.f32 %v1478, 1e-05
        %v1481 = vadd.f32 %v1479, 1e-05
        %v1482 = vrsqrt.pop %v1480
        %v1483 = vmul.f32 %v1482, %v1480
        %v1484 = vmul.f32 %v1483, %v1482
        %v1485 = vmul.f32 0.5, %v1484
        %v1486 = vsub.f32 1.5, %v1485
        %v1487 = vmul.f32 %v1482, %v1486
        %vm1488 = vweird.f32 %v1480
        %vm1489 = vweird.f32 %v1482
        %vm1490 = vmor %vm1488, %vm1489
        %v1491 = vsel %vm1490, %v1482, %v1487
        %v1492 = vrsqrt.pop %v1481
        %v1493 = vmul.f32 %v1492, %v1481
        %v1494 = vmul.f32 %v1493, %v1492
        %v1495 = vmul.f32 0.5, %v1494
        %v1496 = vsub.f32 1.5, %v1495
        %v1497 = vmul.f32 %v1492, %v1496
        %vm1498 = vweird.f32 %v1481
        %vm1499 = vweird.f32 %v1492
        %vm1500 = vmor %vm1498, %vm1499
        %v1501 = vsel %vm1500, %v1492, %v1497
        %v1502 = vmul.f32 %v1468, %v1491
        %v1503 = vmul.f32 %v1469, %v1501
        %v1504 = vperm.slane %v1325, 0
        %v1505 = vmul.f32 %v1502, %v1504
        %v1506 = vmul.f32 %v1503, %v1504
        %v1507 = vperm.slane %v1326, 0
        %v1508 = vadd.f32 %v1505, %v1507
        %v1509 = vadd.f32 %v1506, %v1507
        %1510 = vst.msk [vmem:[%s176] sm:$0xff] %vm228, %v1508
        %1511 = vst.msk [vmem:[%s176 + $0x8] sm:$0xff] %vm228, %v1509
        %s1512 = sand.u32 %s98, 1
        %s1513 = scalar_lea.sflag [#allocation3], %s1512
        %s1514 = sand.u32 %s98, 1
        %s1515 = smul.addr %s1514, 16
        %s1516 = scalar_lea.vmem [#allocation2], %s1515
        // Predicated region
        $region33: #{gt_layer_forward.1} parent=31 // pred_check
          %p1517 = pneg %p108
        $region34: #{gt_layer_forward.1} parent=31 // pred_check_branch
          %1519 = sbr.rel (%p1517) target = $region36
        $region35: #{gt_layer_forward.1} parent=31 // pred_region
          %1521 = vsyncadd %s1513, 0
          %s1522 = smul.addr %s17, 2
          %s1523 = smul.addr %s1522, 8
          %s1524 = scalar_lea.hbm %s3, %s1523
          %s1525 = sshll.u32 %s1516, 4
          %s1526 = int_to_ptr.vmem [resolvable:$true] %s1525
          %s1527 = sshll.u32 %s1524, 4
          %s1528 = int_to_ptr.hbm [resolvable:$true] %s1527
          %1533 = dma.vmem_to_hbm [thread:$0]  %s1526, 256, %s1528, %s1513, 128, 128, 8
        $region36: #{gt_layer_forward.1} parent=31 // pred_fallthru
          _
      $region32: #{gt_layer_forward.1} parent=5 // pred_fallthru
        _
      %p1534 = scmp.le.s32.totalorder 2, %s12
      // Predicated region
      $region37: #{gt_layer_forward.1} parent=5 // pred_check
        %p1535 = pneg %p1534
      $region38: #{gt_layer_forward.1} parent=5 // pred_check_branch
        %1537 = sbr.rel (%p1535) target = $region40
      $region39: #{gt_layer_forward.1} parent=5 // pred_region
        %s1538 = ssub.s32 %s12, 2
        // Predicated region
        $region41: #{gt_layer_forward.1} parent=39 // pred_check
          %p1539 = pneg %p114
        $region42: #{gt_layer_forward.1} parent=39 // pred_check_branch
          %1541 = sbr.rel (%p1539) target = $region44
        $region43: #{gt_layer_forward.1} parent=39 // pred_region
          %s1542 = sand.u32 %s99, 1
          %s1543 = scalar_lea.sflag [#allocation3], %s1542
          %s1544 = sand.u32 %s99, 1
          %s1545 = smul.addr %s1544, 16
          %s1546 = scalar_lea.vmem [#allocation2], %s1545
          %1548 = dma.done %s1543, 256
        $region44: #{gt_layer_forward.1} parent=39 // pred_fallthru
          _
      $region40: #{gt_layer_forward.1} parent=5 // pred_fallthru
        _
    $region6: #{gt_layer_forward.1} parent=1 // loop_footer
      %s16 = sadd.s32 1, %s12
    $region7: #{gt_layer_forward.1} parent=1 // loop_footer_branch
      %11 = sbr.rel target = $region3
    $region8: #{gt_layer_forward.1} parent=1 // loop_exit
      _
    %1549 = vsyncpa [#allocation3], 1
    %s1550 = scalar_lea.sflag [#allocation3], 1
    %1551 = vsyncpa %s1550, 1

</llo_original>
